<compile_context>
chip_gen: v5e
topology: v5e:2x2
jax: 0.10.0
libtpu: 0.0.40
codegen_flags: <defaults>
</compile_context>

<pallas_src>
import jax
import jax.numpy as jnp
import numpy as np
from jax.experimental import pallas as pl
from jax.experimental.pallas import tpu as pltpu


# ----------------------------------------------------------------------------
# Kernels
# ----------------------------------------------------------------------------
def _clap_proj_step_kernel(x_ref, w1_ref, b1_ref, w2_ref, b2_ref, o_ref):
    """One grid step == one projection (p=0 audio, p=1 text).  Used on v7x
    where dimension_semantics=("parallel",) puts one projection on each
    TensorCore.  bf16 operands go straight to the MXU; bias/ReLU in f32."""
    x = x_ref[...].astype(jnp.bfloat16)                                # (Bp, H)
    h = jnp.dot(x, w1_ref[...], preferred_element_type=jnp.float32)    # bf16 x bf16 -> f32
    h = jnp.maximum(h + b1_ref[...], 0.0).astype(jnp.bfloat16)         # ReLU epilogue (f32) -> bf16
    o = jnp.dot(h, w2_ref[...], preferred_element_type=jnp.float32) + b2_ref[...]
    o_ref[...] = o.astype(o_ref.dtype)


def _clap_proj_fused_kernel(x_ref, w1_ref, b1_ref, w2_ref, b2_ref, o_ref):
    """Single-grid-step variant for 1-TC chips (v5e / v6e): both projections
    unrolled in one body so the second grid step's serial overhead vanishes
    and both weight DMAs issue up front."""
    for p in range(2):                                                 # trace-time unroll
        x = x_ref[p].astype(jnp.bfloat16)                              # (Bp, H)
        h = jnp.dot(x, w1_ref[p], preferred_element_type=jnp.float32)
        h = jnp.maximum(h + b1_ref[p], 0.0).astype(jnp.bfloat16)
        o = jnp.dot(h, w2_ref[p], preferred_element_type=jnp.float32) + b2_ref[p]
        o_ref[p] = o.astype(o_ref.dtype)


# ----------------------------------------------------------------------------
# Wrappers
# ----------------------------------------------------------------------------
def _round_up(n, m):
    return ((n + m - 1) // m) * m


def _num_tensorcores_per_chip():
    # v7x has 2 TensorCores per chip; v5e/v6e have 1.
    try:
        kind = jax.devices()[0].device_kind.lower()
    except Exception:
        return 1
    return 2 if "v7" in kind else 1


def prepare_clap_params(params):
    """One-time parameter prep (model init, not per forward): stack the two
    projection MLPs and store weights in bf16 (halves weight DMA, native MXU
    operand dtype).  Biases stay f32 for the epilogue."""
    w1 = jnp.stack([params["audio_w1"], params["text_w1"]]).astype(jnp.bfloat16)  # (2, H, E)
    w2 = jnp.stack([params["audio_w2"], params["text_w2"]]).astype(jnp.bfloat16)  # (2, E, E)
    b1 = jnp.stack([params["audio_b1"], params["text_b1"]]).astype(jnp.float32)
    b2 = jnp.stack([params["audio_b2"], params["text_b2"]]).astype(jnp.float32)
    E = b1.shape[-1]
    return {"w1": w1, "b1": b1.reshape(2, 1, E), "w2": w2, "b2": b2.reshape(2, 1, E)}


def hance_clap_forward(encoded_audio, text_last_hidden_state, prepared):
    """Post-encoder part of HANCECLAP.forward:
         audio_features = audio_projection(encoded_audio)
         text_features  = text_projection(mean_T(last_hidden_state))
       Returns (audio_features, text_features), each (B, E) f32."""
    B, H = encoded_audio.shape
    E = prepared["w2"].shape[-1]

    # torch.mean(..., dim=1) — done in the wrapper (text-encoder epilogue),
    # so only the pooled (B, H) tensor enters the kernel.
    pooled_text = jnp.mean(text_last_hidden_state.astype(jnp.float32), axis=1)

    # Pad batch to a sublane multiple so output stores are unmasked.
    Bp = _round_up(max(B, 1), 8)
    xa = encoded_audio.astype(jnp.float32)
    xt = pooled_text
    if Bp != B:
        pad = ((0, Bp - B), (0, 0))
        xa = jnp.pad(xa, pad)
        xt = jnp.pad(xt, pad)
    x = jnp.stack([xa, xt])                                            # (2, Bp, H)

    flops = 2 * (2 * Bp * H * E + 2 * Bp * E * E)
    bytes_accessed = (x.size * 4
                      + prepared["w1"].size * 2 + prepared["w2"].size * 2
                      + prepared["b1"].size * 4 + prepared["b2"].size * 4
                      + 2 * Bp * E * 4)
    cost = pl.CostEstimate(flops=flops, transcendentals=0, bytes_accessed=bytes_accessed)
    out_shape = jax.ShapeDtypeStruct((2, Bp, E), jnp.float32)

    if _num_tensorcores_per_chip() >= 2:
        # v7x: two grid steps marked "parallel" — one projection per TensorCore.
        out = pl.pallas_call(
            _clap_proj_step_kernel,
            out_shape=out_shape,
            grid=(2,),
            in_specs=[
                pl.BlockSpec((None, Bp, H), lambda p: (p, 0, 0)),
                pl.BlockSpec((None, H, E), lambda p: (p, 0, 0)),
                pl.BlockSpec((None, 1, E), lambda p: (p, 0, 0)),
                pl.BlockSpec((None, E, E), lambda p: (p, 0, 0)),
                pl.BlockSpec((None, 1, E), lambda p: (p, 0, 0)),
            ],
            out_specs=pl.BlockSpec((None, Bp, E), lambda p: (p, 0, 0)),
            compiler_params=pltpu.CompilerParams(dimension_semantics=("parallel",)),
            cost_estimate=cost,
        )(x, prepared["w1"], prepared["b1"], prepared["w2"], prepared["b2"])
    else:
        # v5e / v6e (1 TC/chip): single grid step, both projections unrolled.
        vmem_spec = pl.BlockSpec(memory_space=pltpu.MemorySpace.VMEM)
        out = pl.pallas_call(
            _clap_proj_fused_kernel,
            out_shape=out_shape,
            in_specs=[vmem_spec, vmem_spec, vmem_spec, vmem_spec, vmem_spec],
            out_specs=vmem_spec,
            cost_estimate=cost,
        )(x, prepared["w1"], prepared["b1"], prepared["w2"], prepared["b2"])

    return out[0, :B], out[1, :B]


# ----------------------------------------------------------------------------
# Reference (plain JAX, f32 weights) for a correctness check
# ----------------------------------------------------------------------------
def _reference(encoded_audio, text_hs, p):
    def mlp(x, w1, b1, w2, b2):
        h = jnp.maximum(x @ w1 + b1, 0.0)
        return h @ w2 + b2
    a = mlp(encoded_audio, p["audio_w1"], p["audio_b1"], p["audio_w2"], p["audio_b2"])
    t = mlp(jnp.mean(text_hs, axis=1), p["text_w1"], p["text_b1"], p["text_w2"], p["text_b2"])
    return a, t


# ----------------------------------------------------------------------------
# Main
# ----------------------------------------------------------------------------
if __name__ == "__main__":
    # Settings implied by the module: hidden 768 from both encoders, joint
    # embed size E, projection='mlp', activation_type='relu'.
    B, T, H, E = 2, 8, 768, 256

    key = jax.random.PRNGKey(0)
    keys = jax.random.split(key, 10)

    # Stubbed encoder outputs (see TODO(synk) at the top).
    encoded_audio = jax.random.normal(keys[0], (B, H), dtype=jnp.float32)
    text_last_hidden_state = jax.random.normal(keys[1], (B, T, H), dtype=jnp.float32)

    def linear_init(kw, kb, fan_in, fan_out):
        bound = 1.0 / np.sqrt(fan_in)
        w = jax.random.uniform(kw, (fan_in, fan_out), jnp.float32, -bound, bound)
        b = jax.random.uniform(kb, (fan_out,), jnp.float32, -bound, bound)
        return w, b

    aw1, ab1 = linear_init(keys[2], keys[3], H, E)
    aw2, ab2 = linear_init(keys[4], keys[5], E, E)
    tw1, tb1 = linear_init(keys[6], keys[7], H, E)
    tw2, tb2 = linear_init(keys[8], keys[9], E, E)

    params = dict(
        audio_w1=aw1, audio_b1=ab1, audio_w2=aw2, audio_b2=ab2,
        text_w1=tw1, text_b1=tb1, text_w2=tw2, text_b2=tb2,
    )
    prepared = prepare_clap_params(params)   # one-time: stack + bf16 weights

    audio_features, text_features = hance_clap_forward(
        encoded_audio, text_last_hidden_state, prepared
    )
    jax.block_until_ready((audio_features, text_features))

    ref_a, ref_t = _reference(encoded_audio, text_last_hidden_state, params)
    assert audio_features.shape == (B, E) and text_features.shape == (B, E)
    # Tolerance covers bf16-operand matmul error (weights + activations in bf16).
    np.testing.assert_allclose(np.asarray(audio_features), np.asarray(ref_a),
                               rtol=2e-2, atol=2e-2)
    np.testing.assert_allclose(np.asarray(text_features), np.asarray(ref_t),
                               rtol=2e-2, atol=2e-2)

    print("KERNEL_OK")
</pallas_src>

<mosaic_0001>
module attributes {stable_mosaic.version = 11 : i64} {
  func.func @_clap_proj_fused_kernel(%arg0: memref<2x8x768xf32, #tpu.memory_space<vmem>>, %arg1: memref<2x768x256xbf16, #tpu.memory_space<vmem>>, %arg2: memref<2x1x256xf32, #tpu.memory_space<vmem>>, %arg3: memref<2x256x256xbf16, #tpu.memory_space<vmem>>, %arg4: memref<2x1x256xf32, #tpu.memory_space<vmem>>, %arg5: memref<2x8x256xf32, #tpu.memory_space<vmem>>) attributes {dimension_semantics = [], scalar_prefetch = 0 : i64, scratch_operands = 0 : i64, tpu.core_type = #tpu.core_type<tc>} {
    %c0 = arith.constant 0 : index
    %c0_0 = arith.constant 0 : index
    %c0_1 = arith.constant 0 : index
    %0 = vector.load %arg0[%c0, %c0_0, %c0_1] : memref<2x8x768xf32, #tpu.memory_space<vmem>>, vector<1x8x768xf32>
    %1 = vector.shape_cast %0 : vector<1x8x768xf32> to vector<8x768xf32>
    %2 = arith.truncf %1 : vector<8x768xf32> to vector<8x768xbf16>
    %c0_2 = arith.constant 0 : index
    %c0_3 = arith.constant 0 : index
    %c0_4 = arith.constant 0 : index
    %3 = vector.load %arg1[%c0_2, %c0_3, %c0_4] : memref<2x768x256xbf16, #tpu.memory_space<vmem>>, vector<1x768x256xbf16>
    %4 = vector.shape_cast %3 : vector<1x768x256xbf16> to vector<768x256xbf16>
    %cst = arith.constant dense<0.000000e+00> : vector<8x256xf32>
    %5 = tpu.matmul %2, %4, %cst {dimension_numbers = #tpu.dot_dimension_numbers<[1], [0], [0], [1], [0, 0, 1, 1], [], []>} : vector<8x768xbf16>, vector<768x256xbf16>, vector<8x256xf32> -> vector<8x256xf32>
    %c0_5 = arith.constant 0 : index
    %c0_6 = arith.constant 0 : index
    %c0_7 = arith.constant 0 : index
    %6 = vector.load %arg2[%c0_5, %c0_6, %c0_7] : memref<2x1x256xf32, #tpu.memory_space<vmem>>, vector<1x1x256xf32>
    %7 = vector.shape_cast %6 : vector<1x1x256xf32> to vector<1x256xf32>
    %8 = vector.broadcast %7 : vector<1x256xf32> to vector<8x256xf32>
    %9 = arith.addf %5, %8 : vector<8x256xf32>
    %cst_8 = arith.constant 0.000000e+00 : f32
    %10 = vector.broadcast %cst_8 : f32 to vector<8x256xf32>
    %11 = arith.maximumf %9, %10 : vector<8x256xf32>
    %12 = arith.truncf %11 : vector<8x256xf32> to vector<8x256xbf16>
    %c0_9 = arith.constant 0 : index
    %c0_10 = arith.constant 0 : index
    %c0_11 = arith.constant 0 : index
    %13 = vector.load %arg3[%c0_9, %c0_10, %c0_11] : memref<2x256x256xbf16, #tpu.memory_space<vmem>>, vector<1x256x256xbf16>
    %14 = vector.shape_cast %13 : vector<1x256x256xbf16> to vector<256x256xbf16>
    %cst_12 = arith.constant dense<0.000000e+00> : vector<8x256xf32>
    %15 = tpu.matmul %12, %14, %cst_12 {dimension_numbers = #tpu.dot_dimension_numbers<[1], [0], [0], [1], [0, 0, 1, 1], [], []>} : vector<8x256xbf16>, vector<256x256xbf16>, vector<8x256xf32> -> vector<8x256xf32>
    %c0_13 = arith.constant 0 : index
    %c0_14 = arith.constant 0 : index
    %c0_15 = arith.constant 0 : index
    %16 = vector.load %arg4[%c0_13, %c0_14, %c0_15] : memref<2x1x256xf32, #tpu.memory_space<vmem>>, vector<1x1x256xf32>
    %17 = vector.shape_cast %16 : vector<1x1x256xf32> to vector<1x256xf32>
    %18 = vector.broadcast %17 : vector<1x256xf32> to vector<8x256xf32>
    %19 = arith.addf %15, %18 : vector<8x256xf32>
    %c0_16 = arith.constant 0 : index
    %c0_17 = arith.constant 0 : index
    %c0_18 = arith.constant 0 : index
    %20 = vector.load %arg5[%c0_16, %c0_17, %c0_18] : memref<2x8x256xf32, #tpu.memory_space<vmem>>, vector<1x8x256xf32>
    %21 = vector.shape_cast %20 : vector<1x8x256xf32> to vector<8x256xf32>
    %22 = vector.shape_cast %19 : vector<8x256xf32> to vector<1x8x256xf32>
    tpu.vector_store %arg5[%c0_16, %c0_17, %c0_18], %22 {strides = array<i32>} : memref<2x8x256xf32, #tpu.memory_space<vmem>>, vector<1x8x256xf32>,
    %c1 = arith.constant 1 : index
    %c0_19 = arith.constant 0 : index
    %c0_20 = arith.constant 0 : index
    %23 = vector.load %arg0[%c1, %c0_19, %c0_20] : memref<2x8x768xf32, #tpu.memory_space<vmem>>, vector<1x8x768xf32>
    %24 = vector.shape_cast %23 : vector<1x8x768xf32> to vector<8x768xf32>
    %25 = arith.truncf %24 : vector<8x768xf32> to vector<8x768xbf16>
    %c1_21 = arith.constant 1 : index
    %c0_22 = arith.constant 0 : index
    %c0_23 = arith.constant 0 : index
    %26 = vector.load %arg1[%c1_21, %c0_22, %c0_23] : memref<2x768x256xbf16, #tpu.memory_space<vmem>>, vector<1x768x256xbf16>
    %27 = vector.shape_cast %26 : vector<1x768x256xbf16> to vector<768x256xbf16>
    %cst_24 = arith.constant dense<0.000000e+00> : vector<8x256xf32>
    %28 = tpu.matmul %25, %27, %cst_24 {dimension_numbers = #tpu.dot_dimension_numbers<[1], [0], [0], [1], [0, 0, 1, 1], [], []>} : vector<8x768xbf16>, vector<768x256xbf16>, vector<8x256xf32> -> vector<8x256xf32>
    %c1_25 = arith.constant 1 : index
    %c0_26 = arith.constant 0 : index
    %c0_27 = arith.constant 0 : index
    %29 = vector.load %arg2[%c1_25, %c0_26, %c0_27] : memref<2x1x256xf32, #tpu.memory_space<vmem>>, vector<1x1x256xf32>
    %30 = vector.shape_cast %29 : vector<1x1x256xf32> to vector<1x256xf32>
    %31 = vector.broadcast %30 : vector<1x256xf32> to vector<8x256xf32>
    %32 = arith.addf %28, %31 : vector<8x256xf32>
    %cst_28 = arith.constant 0.000000e+00 : f32
    %33 = vector.broadcast %cst_28 : f32 to vector<8x256xf32>
    %34 = arith.maximumf %32, %33 : vector<8x256xf32>
    %35 = arith.truncf %34 : vector<8x256xf32> to vector<8x256xbf16>
    %c1_29 = arith.constant 1 : index
    %c0_30 = arith.constant 0 : index
    %c0_31 = arith.constant 0 : index
    %36 = vector.load %arg3[%c1_29, %c0_30, %c0_31] : memref<2x256x256xbf16, #tpu.memory_space<vmem>>, vector<1x256x256xbf16>
    %37 = vector.shape_cast %36 : vector<1x256x256xbf16> to vector<256x256xbf16>
    %cst_32 = arith.constant dense<0.000000e+00> : vector<8x256xf32>
    %38 = tpu.matmul %35, %37, %cst_32 {dimension_numbers = #tpu.dot_dimension_numbers<[1], [0], [0], [1], [0, 0, 1, 1], [], []>} : vector<8x256xbf16>, vector<256x256xbf16>, vector<8x256xf32> -> vector<8x256xf32>
    %c1_33 = arith.constant 1 : index
    %c0_34 = arith.constant 0 : index
    %c0_35 = arith.constant 0 : index
    %39 = vector.load %arg4[%c1_33, %c0_34, %c0_35] : memref<2x1x256xf32, #tpu.memory_space<vmem>>, vector<1x1x256xf32>
    %40 = vector.shape_cast %39 : vector<1x1x256xf32> to vector<1x256xf32>
    %41 = vector.broadcast %40 : vector<1x256xf32> to vector<8x256xf32>
    %42 = arith.addf %38, %41 : vector<8x256xf32>
    %c1_36 = arith.constant 1 : index
    %c0_37 = arith.constant 0 : index
    %c0_38 = arith.constant 0 : index
    %43 = vector.load %arg5[%c1_36, %c0_37, %c0_38] : memref<2x8x256xf32, #tpu.memory_space<vmem>>, vector<1x8x256xf32>
    %44 = vector.shape_cast %43 : vector<1x8x256xf32> to vector<8x256xf32>
    %45 = vector.shape_cast %42 : vector<8x256xf32> to vector<1x8x256xf32>
    tpu.vector_store %arg5[%c1_36, %c0_37, %c0_38], %45 {strides = array<i32>} : memref<2x8x256xf32, #tpu.memory_space<vmem>>, vector<1x8x256xf32>,
    return
  }
}

</mosaic_0001>

<llo_original>
// kernel: tpu_custom_call.1
$region0: #{tpu_custom_call.1}
  #allocation0 [shape = 'u32[]', space=smem, size = 0x4, offset = 0x4, fixed_abs, tag = 'smem constant byte address 0x4 - core index']
  #allocation1 [shape = 'u32[72,128]{1,0:T(1,128)}', space=vmem, size = 0x9000, scoped, tag = 'internal scratch']
  %s0 = inlined_call_operand.hbm [shape: f32[2,8,768], index: 0, kind: input, shape index: {}]
  %s1 = inlined_call_operand.hbm [shape: bf16[2,768,256], index: 1, kind: input, shape index: {}]
  %s2 = inlined_call_operand.hbm [shape: f32[2,1,256], index: 2, kind: input, shape index: {}]
  %s3 = inlined_call_operand.hbm [shape: bf16[2,256,256], index: 3, kind: input, shape index: {}]
  %s4 = inlined_call_operand.hbm [shape: f32[2,1,256], index: 4, kind: input, shape index: {}]
  %s5 = inlined_call_operand.hbm [shape: f32[2,8,256], index: 5, kind: output, shape index: {}]
  %s6 = sld [smem:[#allocation0]]
  $region50: #{tpu_custom_call.1} parent=0
    _
  %s8 = ssub.s32 1, %s6
  %s9 = scalar_select 0, %s8, %s6
  $region1: #{tpu_custom_call.1} parent=0
    #allocation2 [shape = 'u8[49152]{0}', space=vmem, size = 0xc000, scoped, tag = 'input window, operand 0, single buffered']
    #allocation3 [shape = 's32[1]{0}', space=sflag, size = 0x4, scoped, tag = 'scoped memory for tpu_custom_call.1']
    #allocation4 [shape = 's32[1]{0}', space=sflag, size = 0x4, scoped, tag = 'scoped memory for tpu_custom_call.1']
    #allocation5 [shape = 'u8[786432]{0}', space=vmem, size = 0xc0000, scoped, tag = 'input window, operand 1, single buffered']
    #allocation6 [shape = 's32[1]{0}', space=sflag, size = 0x4, scoped, tag = 'scoped memory for tpu_custom_call.1']
    #allocation7 [shape = 'u8[2048]{0}', space=vmem, size = 0x800, scoped, tag = 'input window, operand 2, single buffered']
    #allocation8 [shape = 'u8[262144]{0}', space=vmem, size = 0x40000, scoped, tag = 'input window, operand 3, single buffered']
    #allocation9 [shape = 's32[1]{0}', space=sflag, size = 0x4, scoped, tag = 'scoped memory for tpu_custom_call.1']
    #allocation10 [shape = 'u8[2048]{0}', space=vmem, size = 0x800, scoped, tag = 'input window, operand 4, single buffered']
    #allocation11 [shape = 'u8[16384]{0}', space=vmem, size = 0x4000, scoped, tag = 'output window, operand 0, single buffered']
    %10 = vsyncpa [#allocation3], 0
    %11 = vsyncpa [#allocation6], 0
    %12 = vsyncpa [#allocation9], 0
    %13 = vsyncpa [#allocation4], 0
    // Predicated region
    $region2: #{tpu_custom_call.1} parent=1 // pred_check
      _
    $region3: #{tpu_custom_call.1} parent=1 // pred_check_branch
      %15 = sbr.rel (0) target = $region5
    $region4: #{tpu_custom_call.1} parent=1 // pred_region
      %17 = vsyncadd [#allocation3], 0
      %s18 = sshll.u32 %s0, 4
      %s19 = int_to_ptr.hbm [resolvable:$true] %s18
      %s20 = sshll.u32 [#allocation2], 4
      %s21 = int_to_ptr.vmem [resolvable:$true] %s20
      %26 = dma.hbm_to_vmem [thread:$0]  %s19, 1536, %s21, [#allocation3], 768, 768, 48
    $region5: #{tpu_custom_call.1} parent=1 // pred_fallthru
      _
    // Predicated region
    $region6: #{tpu_custom_call.1} parent=1 // pred_check
      _
    $region7: #{tpu_custom_call.1} parent=1 // pred_check_branch
      %28 = sbr.rel (0) target = $region9
    $region8: #{tpu_custom_call.1} parent=1 // pred_region
      %30 = vsyncadd [#allocation6], 0
      %s31 = sshll.u32 %s1, 4
      %s32 = int_to_ptr.hbm [resolvable:$true] %s31
      %s33 = sshll.u32 [#allocation5], 4
      %s34 = int_to_ptr.vmem [resolvable:$true] %s33
      %39 = dma.hbm_to_vmem [thread:$0]  %s32, 24576, %s34, [#allocation6], 128, 128, 8
    $region9: #{tpu_custom_call.1} parent=1 // pred_fallthru
      _
    // Predicated region
    $region10: #{tpu_custom_call.1} parent=1 // pred_check
      _
    $region11: #{tpu_custom_call.1} parent=1 // pred_check_branch
      %41 = sbr.rel (0) target = $region13
    $region12: #{tpu_custom_call.1} parent=1 // pred_region
      %43 = vsyncadd [#allocation6], 0
      %s44 = sshll.u32 %s2, 4
      %s45 = int_to_ptr.hbm [resolvable:$true] %s44
      %s46 = sshll.u32 [#allocation7], 4
      %s47 = int_to_ptr.vmem [resolvable:$true] %s46
      %52 = dma.hbm_to_vmem [thread:$0]  %s45, 64, %s47, [#allocation6], 32, 32, 2
    $region13: #{tpu_custom_call.1} parent=1 // pred_fallthru
      _
    // Predicated region
    $region14: #{tpu_custom_call.1} parent=1 // pred_check
      _
    $region15: #{tpu_custom_call.1} parent=1 // pred_check_branch
      %54 = sbr.rel (0) target = $region17
    $region16: #{tpu_custom_call.1} parent=1 // pred_region
      %56 = vsyncadd [#allocation9], 0
      %s57 = sshll.u32 %s3, 4
      %s58 = int_to_ptr.hbm [resolvable:$true] %s57
      %s59 = sshll.u32 [#allocation8], 4
      %s60 = int_to_ptr.vmem [resolvable:$true] %s59
      %65 = dma.hbm_to_vmem [thread:$0]  %s58, 8192, %s60, [#allocation9], 128, 128, 8
    $region17: #{tpu_custom_call.1} parent=1 // pred_fallthru
      _
    // Predicated region
    $region18: #{tpu_custom_call.1} parent=1 // pred_check
      _
    $region19: #{tpu_custom_call.1} parent=1 // pred_check_branch
      %67 = sbr.rel (0) target = $region21
    $region20: #{tpu_custom_call.1} parent=1 // pred_region
      %69 = vsyncadd [#allocation9], 0
      %s70 = sshll.u32 %s4, 4
      %s71 = int_to_ptr.hbm [resolvable:$true] %s70
      %s72 = sshll.u32 [#allocation10], 4
      %s73 = int_to_ptr.vmem [resolvable:$true] %s72
      %78 = dma.hbm_to_vmem [thread:$0]  %s71, 64, %s73, [#allocation9], 32, 32, 2
    $region21: #{tpu_custom_call.1} parent=1 // pred_fallthru
      _
    // Predicated region
    $region22: #{tpu_custom_call.1} parent=1 // pred_check
      _
    $region23: #{tpu_custom_call.1} parent=1 // pred_check_branch
      %80 = sbr.rel (0) target = $region25
    $region24: #{tpu_custom_call.1} parent=1 // pred_region
      %82 = dma.done [#allocation3], 1536
    $region25: #{tpu_custom_call.1} parent=1 // pred_fallthru
      _
    // Predicated region
    $region26: #{tpu_custom_call.1} parent=1 // pred_check
      _
    $region27: #{tpu_custom_call.1} parent=1 // pred_check_branch
      %84 = sbr.rel (0) target = $region29
    $region28: #{tpu_custom_call.1} parent=1 // pred_region
      %86 = dma.done [#allocation6], 24576
    $region29: #{tpu_custom_call.1} parent=1 // pred_fallthru
      _
    // Predicated region
    $region30: #{tpu_custom_call.1} parent=1 // pred_check
      _
    $region31: #{tpu_custom_call.1} parent=1 // pred_check_branch
      %88 = sbr.rel (0) target = $region33
    $region32: #{tpu_custom_call.1} parent=1 // pred_region
      %90 = dma.done [#allocation6], 64
    $region33: #{tpu_custom_call.1} parent=1 // pred_fallthru
      _
    // Predicated region
    $region34: #{tpu_custom_call.1} parent=1 // pred_check
      _
    $region35: #{tpu_custom_call.1} parent=1 // pred_check_branch
      %92 = sbr.rel (0) target = $region37
    $region36: #{tpu_custom_call.1} parent=1 // pred_region
      %94 = dma.done [#allocation9], 8192
    $region37: #{tpu_custom_call.1} parent=1 // pred_fallthru
      _
    // Predicated region
    $region38: #{tpu_custom_call.1} parent=1 // pred_check
      _
    $region39: #{tpu_custom_call.1} parent=1 // pred_check_branch
      %96 = sbr.rel (0) target = $region41
    $region40: #{tpu_custom_call.1} parent=1 // pred_region
      %98 = dma.done [#allocation9], 64
    $region41: #{tpu_custom_call.1} parent=1 // pred_fallthru
      _
    %v99 = vld [vmem:[#allocation2] sm:$0xff]
    %v100 = vld [vmem:[#allocation2 + $0x8] sm:$0xff]
    %v101 = vld [vmem:[#allocation2 + $0x10] sm:$0xff]
    %v102 = vld [vmem:[#allocation2 + $0x18] sm:$0xff]
    %v103 = vld [vmem:[#allocation2 + $0x20] sm:$0xff]
    %v104 = vld [vmem:[#allocation2 + $0x28] sm:$0xff]
    %v105 = vpack.c.bf16 %v99, %v99
    %v106 = vpack.c.bf16 %v100, %v100
    %v107 = vpack.c.bf16 %v101, %v101
    %v108 = vpack.c.bf16 %v102, %v102
    %v109 = vpack.c.bf16 %v103, %v103
    %v110 = vpack.c.bf16 %v104, %v104
    %v111 = vld [vmem:[#allocation5] sm:$0xff]
    %v112 = vld [vmem:[#allocation5 + $0x8] sm:$0xff]
    %v113 = vld [vmem:[#allocation5 + $0x10] sm:$0xff]
    %v114 = vld [vmem:[#allocation5 + $0x18] sm:$0xff]
    %v115 = vld [vmem:[#allocation5 + $0x20] sm:$0xff]
    %v116 = vld [vmem:[#allocation5 + $0x28] sm:$0xff]
    %v117 = vld [vmem:[#allocation5 + $0x30] sm:$0xff]
    %v118 = vld [vmem:[#allocation5 + $0x38] sm:$0xff]
    %v119 = vld [vmem:[#allocation5 + $0x40] sm:$0xff]
    %v120 = vld [vmem:[#allocation5 + $0x48] sm:$0xff]
    %v121 = vld [vmem:[#allocation5 + $0x50] sm:$0xff]
    %v122 = vld [vmem:[#allocation5 + $0x58] sm:$0xff]
    %v123 = vld [vmem:[#allocation5 + $0x60] sm:$0xff]
    %v124 = vld [vmem:[#allocation5 + $0x68] sm:$0xff]
    %v125 = vld [vmem:[#allocation5 + $0x70] sm:$0xff]
    %v126 = vld [vmem:[#allocation5 + $0x78] sm:$0xff]
    %v127 = vld [vmem:[#allocation5 + $0x80] sm:$0xff]
    %v128 = vld [vmem:[#allocation5 + $0x88] sm:$0xff]
    %v129 = vld [vmem:[#allocation5 + $0x90] sm:$0xff]
    %v130 = vld [vmem:[#allocation5 + $0x98] sm:$0xff]
    %v131 = vld [vmem:[#allocation5 + $0xa0] sm:$0xff]
    %v132 = vld [vmem:[#allocation5 + $0xa8] sm:$0xff]
    %v133 = vld [vmem:[#allocation5 + $0xb0] sm:$0xff]
    %v134 = vld [vmem:[#allocation5 + $0xb8] sm:$0xff]
    %v135 = vld [vmem:[#allocation5 + $0xc0] sm:$0xff]
    %v136 = vld [vmem:[#allocation5 + $0xc8] sm:$0xff]
    %v137 = vld [vmem:[#allocation5 + $0xd0] sm:$0xff]
    %v138 = vld [vmem:[#allocation5 + $0xd8] sm:$0xff]
    %v139 = vld [vmem:[#allocation5 + $0xe0] sm:$0xff]
    %v140 = vld [vmem:[#allocation5 + $0xe8] sm:$0xff]
    %v141 = vld [vmem:[#allocation5 + $0xf0] sm:$0xff]
    %v142 = vld [vmem:[#allocation5 + $0xf8] sm:$0xff]
    %v143 = vld [vmem:[#allocation5 + $0x100] sm:$0xff]
    %v144 = vld [vmem:[#allocation5 + $0x108] sm:$0xff]
    %v145 = vld [vmem:[#allocation5 + $0x110] sm:$0xff]
    %v146 = vld [vmem:[#allocation5 + $0x118] sm:$0xff]
    %v147 = vld [vmem:[#allocation5 + $0x120] sm:$0xff]
    %v148 = vld [vmem:[#allocation5 + $0x128] sm:$0xff]
    %v149 = vld [vmem:[#allocation5 + $0x130] sm:$0xff]
    %v150 = vld [vmem:[#allocation5 + $0x138] sm:$0xff]
    %v151 = vld [vmem:[#allocation5 + $0x140] sm:$0xff]
    %v152 = vld [vmem:[#allocation5 + $0x148] sm:$0xff]
    %v153 = vld [vmem:[#allocation5 + $0x150] sm:$0xff]
    %v154 = vld [vmem:[#allocation5 + $0x158] sm:$0xff]
    %v155 = vld [vmem:[#allocation5 + $0x160] sm:$0xff]
    %v156 = vld [vmem:[#allocation5 + $0x168] sm:$0xff]
    %v157 = vld [vmem:[#allocation5 + $0x170] sm:$0xff]
    %v158 = vld [vmem:[#allocation5 + $0x178] sm:$0xff]
    %v159 = vld [vmem:[#allocation5 + $0x180] sm:$0xff]
    %v160 = vld [vmem:[#allocation5 + $0x188] sm:$0xff]
    %v161 = vld [vmem:[#allocation5 + $0x190] sm:$0xff]
    %v162 = vld [vmem:[#allocation5 + $0x198] sm:$0xff]
    %v163 = vld [vmem:[#allocation5 + $0x1a0] sm:$0xff]
    %v164 = vld [vmem:[#allocation5 + $0x1a8] sm:$0xff]
    %v165 = vld [vmem:[#allocation5 + $0x1b0] sm:$0xff]
    %v166 = vld [vmem:[#allocation5 + $0x1b8] sm:$0xff]
    %v167 = vld [vmem:[#allocation5 + $0x1c0] sm:$0xff]
    %v168 = vld [vmem:[#allocation5 + $0x1c8] sm:$0xff]
    %v169 = vld [vmem:[#allocation5 + $0x1d0] sm:$0xff]
    %v170 = vld [vmem:[#allocation5 + $0x1d8] sm:$0xff]
    %v171 = vld [vmem:[#allocation5 + $0x1e0] sm:$0xff]
    %v172 = vld [vmem:[#allocation5 + $0x1e8] sm:$0xff]
    %v173 = vld [vmem:[#allocation5 + $0x1f0] sm:$0xff]
    %v174 = vld [vmem:[#allocation5 + $0x1f8] sm:$0xff]
    %v175 = vld [vmem:[#allocation5 + $0x200] sm:$0xff]
    %v176 = vld [vmem:[#allocation5 + $0x208] sm:$0xff]
    %v177 = vld [vmem:[#allocation5 + $0x210] sm:$0xff]
    %v178 = vld [vmem:[#allocation5 + $0x218] sm:$0xff]
    %v179 = vld [vmem:[#allocation5 + $0x220] sm:$0xff]
    %v180 = vld [vmem:[#allocation5 + $0x228] sm:$0xff]
    %v181 = vld [vmem:[#allocation5 + $0x230] sm:$0xff]
    %v182 = vld [vmem:[#allocation5 + $0x238] sm:$0xff]
    %v183 = vld [vmem:[#allocation5 + $0x240] sm:$0xff]
    %v184 = vld [vmem:[#allocation5 + $0x248] sm:$0xff]
    %v185 = vld [vmem:[#allocation5 + $0x250] sm:$0xff]
    %v186 = vld [vmem:[#allocation5 + $0x258] sm:$0xff]
    %v187 = vld [vmem:[#allocation5 + $0x260] sm:$0xff]
    %v188 = vld [vmem:[#allocation5 + $0x268] sm:$0xff]
    %v189 = vld [vmem:[#allocation5 + $0x270] sm:$0xff]
    %v190 = vld [vmem:[#allocation5 + $0x278] sm:$0xff]
    %v191 = vld [vmem:[#allocation5 + $0x280] sm:$0xff]
    %v192 = vld [vmem:[#allocation5 + $0x288] sm:$0xff]
    %v193 = vld [vmem:[#allocation5 + $0x290] sm:$0xff]
    %v194 = vld [vmem:[#allocation5 + $0x298] sm:$0xff]
    %v195 = vld [vmem:[#allocation5 + $0x2a0] sm:$0xff]
    %v196 = vld [vmem:[#allocation5 + $0x2a8] sm:$0xff]
    %v197 = vld [vmem:[#allocation5 + $0x2b0] sm:$0xff]
    %v198 = vld [vmem:[#allocation5 + $0x2b8] sm:$0xff]
    %v199 = vld [vmem:[#allocation5 + $0x2c0] sm:$0xff]
    %v200 = vld [vmem:[#allocation5 + $0x2c8] sm:$0xff]
    %v201 = vld [vmem:[#allocation5 + $0x2d0] sm:$0xff]
    %v202 = vld [vmem:[#allocation5 + $0x2d8] sm:$0xff]
    %v203 = vld [vmem:[#allocation5 + $0x2e0] sm:$0xff]
    %v204 = vld [vmem:[#allocation5 + $0x2e8] sm:$0xff]
    %v205 = vld [vmem:[#allocation5 + $0x2f0] sm:$0xff]
    %v206 = vld [vmem:[#allocation5 + $0x2f8] sm:$0xff]
    %v207 = vld [vmem:[#allocation7] sm:$0x3]
    %v209 = vperm.slane %v207, 0
    %v210 = vperm.slane %v207, 1
    %v309 = vunpack.c.l.b16 %v111
    %v310 = vunpack.c.h.b16 %v111
    %v311 = vunpack.c.l.b16 %v112
    %v312 = vunpack.c.h.b16 %v112
    %v313 = vunpack.c.l.b16 %v113
    %v314 = vunpack.c.h.b16 %v113
    %v315 = vunpack.c.l.b16 %v114
    %v316 = vunpack.c.h.b16 %v114
    %v317 = vunpack.c.l.b16 %v115
    %v318 = vunpack.c.h.b16 %v115
    %v319 = vunpack.c.l.b16 %v116
    %v320 = vunpack.c.h.b16 %v116
    %v321 = vunpack.c.l.b16 %v117
    %v322 = vunpack.c.h.b16 %v117
    %v323 = vunpack.c.l.b16 %v118
    %v324 = vunpack.c.h.b16 %v118
    %v325 = vunpack.c.l.b16 %v119
    %v326 = vunpack.c.h.b16 %v119
    %v327 = vunpack.c.l.b16 %v120
    %v328 = vunpack.c.h.b16 %v120
    %v329 = vunpack.c.l.b16 %v121
    %v330 = vunpack.c.h.b16 %v121
    %v331 = vunpack.c.l.b16 %v122
    %v332 = vunpack.c.h.b16 %v122
    %v333 = vunpack.c.l.b16 %v123
    %v334 = vunpack.c.h.b16 %v123
    %v335 = vunpack.c.l.b16 %v124
    %v336 = vunpack.c.h.b16 %v124
    %v337 = vunpack.c.l.b16 %v125
    %v338 = vunpack.c.h.b16 %v125
    %v339 = vunpack.c.l.b16 %v126
    %v340 = vunpack.c.h.b16 %v126
    %v341 = vunpack.c.l.b16 %v127
    %v342 = vunpack.c.h.b16 %v127
    %v343 = vunpack.c.l.b16 %v128
    %v344 = vunpack.c.h.b16 %v128
    %v345 = vunpack.c.l.b16 %v129
    %v346 = vunpack.c.h.b16 %v129
    %v347 = vunpack.c.l.b16 %v130
    %v348 = vunpack.c.h.b16 %v130
    %v349 = vunpack.c.l.b16 %v131
    %v350 = vunpack.c.h.b16 %v131
    %v351 = vunpack.c.l.b16 %v132
    %v352 = vunpack.c.h.b16 %v132
    %v353 = vunpack.c.l.b16 %v133
    %v354 = vunpack.c.h.b16 %v133
    %v355 = vunpack.c.l.b16 %v134
    %v356 = vunpack.c.h.b16 %v134
    %v357 = vunpack.c.l.b16 %v135
    %v358 = vunpack.c.h.b16 %v135
    %v359 = vunpack.c.l.b16 %v136
    %v360 = vunpack.c.h.b16 %v136
    %v361 = vunpack.c.l.b16 %v137
    %v362 = vunpack.c.h.b16 %v137
    %v363 = vunpack.c.l.b16 %v138
    %v364 = vunpack.c.h.b16 %v138
    %v365 = vunpack.c.l.b16 %v139
    %v366 = vunpack.c.h.b16 %v139
    %v367 = vunpack.c.l.b16 %v140
    %v368 = vunpack.c.h.b16 %v140
    %v369 = vunpack.c.l.b16 %v141
    %v370 = vunpack.c.h.b16 %v141
    %v371 = vunpack.c.l.b16 %v142
    %v372 = vunpack.c.h.b16 %v142
    %v373 = vunpack.c.l.b16 %v143
    %v374 = vunpack.c.h.b16 %v143
    %v375 = vunpack.c.l.b16 %v144
    %v376 = vunpack.c.h.b16 %v144
    %v377 = vunpack.c.l.b16 %v145
    %v378 = vunpack.c.h.b16 %v145
    %v379 = vunpack.c.l.b16 %v146
    %v380 = vunpack.c.h.b16 %v146
    %v381 = vunpack.c.l.b16 %v147
    %v382 = vunpack.c.h.b16 %v147
    %v383 = vunpack.c.l.b16 %v148
    %v384 = vunpack.c.h.b16 %v148
    %v385 = vunpack.c.l.b16 %v149
    %v386 = vunpack.c.h.b16 %v149
    %v387 = vunpack.c.l.b16 %v150
    %v388 = vunpack.c.h.b16 %v150
    %v389 = vunpack.c.l.b16 %v151
    %v390 = vunpack.c.h.b16 %v151
    %v391 = vunpack.c.l.b16 %v152
    %v392 = vunpack.c.h.b16 %v152
    %v393 = vunpack.c.l.b16 %v153
    %v394 = vunpack.c.h.b16 %v153
    %v395 = vunpack.c.l.b16 %v154
    %v396 = vunpack.c.h.b16 %v154
    %v397 = vunpack.c.l.b16 %v155
    %v398 = vunpack.c.h.b16 %v155
    %v399 = vunpack.c.l.b16 %v156
    %v400 = vunpack.c.h.b16 %v156
    %v401 = vunpack.c.l.b16 %v157
    %v402 = vunpack.c.h.b16 %v157
    %v403 = vunpack.c.l.b16 %v158
    %v404 = vunpack.c.h.b16 %v158
    %v405 = vunpack.c.l.b16 %v159
    %v406 = vunpack.c.h.b16 %v159
    %v407 = vunpack.c.l.b16 %v160
    %v408 = vunpack.c.h.b16 %v160
    %v409 = vunpack.c.l.b16 %v161
    %v410 = vunpack.c.h.b16 %v161
    %v411 = vunpack.c.l.b16 %v162
    %v412 = vunpack.c.h.b16 %v162
    %v413 = vunpack.c.l.b16 %v163
    %v414 = vunpack.c.h.b16 %v163
    %v415 = vunpack.c.l.b16 %v164
    %v416 = vunpack.c.h.b16 %v164
    %v417 = vunpack.c.l.b16 %v165
    %v418 = vunpack.c.h.b16 %v165
    %v419 = vunpack.c.l.b16 %v166
    %v420 = vunpack.c.h.b16 %v166
    %v421 = vunpack.c.l.b16 %v167
    %v422 = vunpack.c.h.b16 %v167
    %v423 = vunpack.c.l.b16 %v168
    %v424 = vunpack.c.h.b16 %v168
    %v425 = vunpack.c.l.b16 %v169
    %v426 = vunpack.c.h.b16 %v169
    %v427 = vunpack.c.l.b16 %v170
    %v428 = vunpack.c.h.b16 %v170
    %v429 = vunpack.c.l.b16 %v171
    %v430 = vunpack.c.h.b16 %v171
    %v431 = vunpack.c.l.b16 %v172
    %v432 = vunpack.c.h.b16 %v172
    %v433 = vunpack.c.l.b16 %v173
    %v434 = vunpack.c.h.b16 %v173
    %v435 = vunpack.c.l.b16 %v174
    %v436 = vunpack.c.h.b16 %v174
    %v437 = vunpack.c.l.b16 %v175
    %v438 = vunpack.c.h.b16 %v175
    %v439 = vunpack.c.l.b16 %v176
    %v440 = vunpack.c.h.b16 %v176
    %v441 = vunpack.c.l.b16 %v177
    %v442 = vunpack.c.h.b16 %v177
    %v443 = vunpack.c.l.b16 %v178
    %v444 = vunpack.c.h.b16 %v178
    %v445 = vunpack.c.l.b16 %v179
    %v446 = vunpack.c.h.b16 %v179
    %v447 = vunpack.c.l.b16 %v180
    %v448 = vunpack.c.h.b16 %v180
    %v449 = vunpack.c.l.b16 %v181
    %v450 = vunpack.c.h.b16 %v181
    %v451 = vunpack.c.l.b16 %v182
    %v452 = vunpack.c.h.b16 %v182
    %v453 = vunpack.c.l.b16 %v183
    %v454 = vunpack.c.h.b16 %v183
    %v455 = vunpack.c.l.b16 %v184
    %v456 = vunpack.c.h.b16 %v184
    %v457 = vunpack.c.l.b16 %v185
    %v458 = vunpack.c.h.b16 %v185
    %v459 = vunpack.c.l.b16 %v186
    %v460 = vunpack.c.h.b16 %v186
    %v461 = vunpack.c.l.b16 %v187
    %v462 = vunpack.c.h.b16 %v187
    %v463 = vunpack.c.l.b16 %v188
    %v464 = vunpack.c.h.b16 %v188
    %v465 = vunpack.c.l.b16 %v189
    %v466 = vunpack.c.h.b16 %v189
    %v467 = vunpack.c.l.b16 %v190
    %v468 = vunpack.c.h.b16 %v190
    %v469 = vunpack.c.l.b16 %v191
    %v470 = vunpack.c.h.b16 %v191
    %v471 = vunpack.c.l.b16 %v192
    %v472 = vunpack.c.h.b16 %v192
    %v473 = vunpack.c.l.b16 %v193
    %v474 = vunpack.c.h.b16 %v193
    %v475 = vunpack.c.l.b16 %v194
    %v476 = vunpack.c.h.b16 %v194
    %v477 = vunpack.c.l.b16 %v195
    %v478 = vunpack.c.h.b16 %v195
    %v479 = vunpack.c.l.b16 %v196
    %v480 = vunpack.c.h.b16 %v196
    %v481 = vunpack.c.l.b16 %v197
    %v482 = vunpack.c.h.b16 %v197
    %v483 = vunpack.c.l.b16 %v198
    %v484 = vunpack.c.h.b16 %v198
    %v485 = vunpack.c.l.b16 %v199
    %v486 = vunpack.c.h.b16 %v199
    %v487 = vunpack.c.l.b16 %v200
    %v488 = vunpack.c.h.b16 %v200
    %v489 = vunpack.c.l.b16 %v201
    %v490 = vunpack.c.h.b16 %v201
    %v491 = vunpack.c.l.b16 %v202
    %v492 = vunpack.c.h.b16 %v202
    %v493 = vunpack.c.l.b16 %v203
    %v494 = vunpack.c.h.b16 %v203
    %v495 = vunpack.c.l.b16 %v204
    %v496 = vunpack.c.h.b16 %v204
    %v497 = vunpack.c.l.b16 %v205
    %v498 = vunpack.c.h.b16 %v205
    %v499 = vunpack.c.l.b16 %v206
    %v500 = vunpack.c.h.b16 %v206
    %v501 = vpack.c.b16 %v311, %v309
    %v502 = vpack.c.b16 %v312, %v310
    %v503 = vpack.c.b16 %v315, %v313
    %v504 = vpack.c.b16 %v316, %v314
    %v505 = vpack.c.b16 %v319, %v317
    %v506 = vpack.c.b16 %v320, %v318
    %v507 = vpack.c.b16 %v323, %v321
    %v508 = vpack.c.b16 %v324, %v322
    %v509 = vpack.c.b16 %v327, %v325
    %v510 = vpack.c.b16 %v328, %v326
    %v511 = vpack.c.b16 %v331, %v329
    %v512 = vpack.c.b16 %v332, %v330
    %v513 = vpack.c.b16 %v335, %v333
    %v514 = vpack.c.b16 %v336, %v334
    %v515 = vpack.c.b16 %v339, %v337
    %v516 = vpack.c.b16 %v340, %v338
    %v517 = vpack.c.b16 %v343, %v341
    %v518 = vpack.c.b16 %v344, %v342
    %v519 = vpack.c.b16 %v347, %v345
    %v520 = vpack.c.b16 %v348, %v346
    %v521 = vpack.c.b16 %v351, %v349
    %v522 = vpack.c.b16 %v352, %v350
    %v523 = vpack.c.b16 %v355, %v353
    %v524 = vpack.c.b16 %v356, %v354
    %v525 = vpack.c.b16 %v359, %v357
    %v526 = vpack.c.b16 %v360, %v358
    %v527 = vpack.c.b16 %v363, %v361
    %v528 = vpack.c.b16 %v364, %v362
    %v529 = vpack.c.b16 %v367, %v365
    %v530 = vpack.c.b16 %v368, %v366
    %v531 = vpack.c.b16 %v371, %v369
    %v532 = vpack.c.b16 %v372, %v370
    %v533 = vpack.c.b16 %v375, %v373
    %v534 = vpack.c.b16 %v376, %v374
    %v535 = vpack.c.b16 %v379, %v377
    %v536 = vpack.c.b16 %v380, %v378
    %v537 = vpack.c.b16 %v383, %v381
    %v538 = vpack.c.b16 %v384, %v382
    %v539 = vpack.c.b16 %v387, %v385
    %v540 = vpack.c.b16 %v388, %v386
    %v541 = vpack.c.b16 %v391, %v389
    %v542 = vpack.c.b16 %v392, %v390
    %v543 = vpack.c.b16 %v395, %v393
    %v544 = vpack.c.b16 %v396, %v394
    %v545 = vpack.c.b16 %v399, %v397
    %v546 = vpack.c.b16 %v400, %v398
    %v547 = vpack.c.b16 %v403, %v401
    %v548 = vpack.c.b16 %v404, %v402
    %v549 = vpack.c.b16 %v407, %v405
    %v550 = vpack.c.b16 %v408, %v406
    %v551 = vpack.c.b16 %v411, %v409
    %v552 = vpack.c.b16 %v412, %v410
    %v553 = vpack.c.b16 %v415, %v413
    %v554 = vpack.c.b16 %v416, %v414
    %v555 = vpack.c.b16 %v419, %v417
    %v556 = vpack.c.b16 %v420, %v418
    %v557 = vpack.c.b16 %v423, %v421
    %v558 = vpack.c.b16 %v424, %v422
    %v559 = vpack.c.b16 %v427, %v425
    %v560 = vpack.c.b16 %v428, %v426
    %v561 = vpack.c.b16 %v431, %v429
    %v562 = vpack.c.b16 %v432, %v430
    %v563 = vpack.c.b16 %v435, %v433
    %v564 = vpack.c.b16 %v436, %v434
    %v565 = vpack.c.b16 %v439, %v437
    %v566 = vpack.c.b16 %v440, %v438
    %v567 = vpack.c.b16 %v443, %v441
    %v568 = vpack.c.b16 %v444, %v442
    %v569 = vpack.c.b16 %v447, %v445
    %v570 = vpack.c.b16 %v448, %v446
    %v571 = vpack.c.b16 %v451, %v449
    %v572 = vpack.c.b16 %v452, %v450
    %v573 = vpack.c.b16 %v455, %v453
    %v574 = vpack.c.b16 %v456, %v454
    %v575 = vpack.c.b16 %v459, %v457
    %v576 = vpack.c.b16 %v460, %v458
    %v577 = vpack.c.b16 %v463, %v461
    %v578 = vpack.c.b16 %v464, %v462
    %v579 = vpack.c.b16 %v467, %v465
    %v580 = vpack.c.b16 %v468, %v466
    %v581 = vpack.c.b16 %v471, %v469
    %v582 = vpack.c.b16 %v472, %v470
    %v583 = vpack.c.b16 %v475, %v473
    %v584 = vpack.c.b16 %v476, %v474
    %v585 = vpack.c.b16 %v479, %v477
    %v586 = vpack.c.b16 %v480, %v478
    %v587 = vpack.c.b16 %v483, %v481
    %v588 = vpack.c.b16 %v484, %v482
    %v589 = vpack.c.b16 %v487, %v485
    %v590 = vpack.c.b16 %v488, %v486
    %v591 = vpack.c.b16 %v491, %v489
    %v592 = vpack.c.b16 %v492, %v490
    %v593 = vpack.c.b16 %v495, %v493
    %v594 = vpack.c.b16 %v496, %v494
    %v595 = vpack.c.b16 %v499, %v497
    %v596 = vpack.c.b16 %v500, %v498
    %693 = vmatpush.bf16.msra.mxu0 %v515
    %694 = vmatpush.bf16.msra.mxu0 %v513
    %695 = vmatpush.bf16.msra.mxu0 %v511
    %696 = vmatpush.bf16.msra.mxu0 %v509
    %697 = vmatpush.bf16.msra.mxu0 %v507
    %698 = vmatpush.bf16.msra.mxu0 %v505
    %699 = vmatpush.bf16.msra.mxu0 %v503
    %700 = vmatpush.bf16.msra.mxu0 %v501
    %701 = vmatmul.bf16.gmra.mxu0 %v105
    %v702 = vpop.f32.mrf.mxu0
    %v703 = vadd.f32 %v209, %v702
    %v704 = vpop.f32.mrf.mxu0
    %705 = vdwg.mxu0
    %706 = vmatpush.bf16.msra.mxu0 %v531
    %707 = vmatpush.bf16.msra.mxu0 %v529
    %708 = vmatpush.bf16.msra.mxu0 %v527
    %709 = vmatpush.bf16.msra.mxu0 %v525
    %710 = vmatpush.bf16.msra.mxu0 %v523
    %711 = vmatpush.bf16.msra.mxu0 %v521
    %712 = vmatpush.bf16.msra.mxu0 %v519
    %713 = vmatpush.bf16.msra.mxu0 %v517
    %714 = vmatmul.bf16.gmra.mxu0 %v106
    %v715 = vpop.f32.mrf.mxu0
    %v716 = vadd.f32 %v703, %v715
    %v717 = vpop.f32.mrf.mxu0
    %718 = vdwg.mxu0
    %719 = vmatpush.bf16.msra.mxu0 %v547
    %720 = vmatpush.bf16.msra.mxu0 %v545
    %721 = vmatpush.bf16.msra.mxu0 %v543
    %722 = vmatpush.bf16.msra.mxu0 %v541
    %723 = vmatpush.bf16.msra.mxu0 %v539
    %724 = vmatpush.bf16.msra.mxu0 %v537
    %725 = vmatpush.bf16.msra.mxu0 %v535
    %726 = vmatpush.bf16.msra.mxu0 %v533
    %727 = vmatmul.bf16.gmra.mxu0 %v107
    %v728 = vpop.f32.mrf.mxu0
    %v729 = vadd.f32 %v716, %v728
    %v730 = vpop.f32.mrf.mxu0
    %731 = vdwg.mxu0
    %732 = vmatpush.bf16.msra.mxu0 %v563
    %733 = vmatpush.bf16.msra.mxu0 %v561
    %734 = vmatpush.bf16.msra.mxu0 %v559
    %735 = vmatpush.bf16.msra.mxu0 %v557
    %736 = vmatpush.bf16.msra.mxu0 %v555
    %737 = vmatpush.bf16.msra.mxu0 %v553
    %738 = vmatpush.bf16.msra.mxu0 %v551
    %739 = vmatpush.bf16.msra.mxu0 %v549
    %740 = vmatmul.bf16.gmra.mxu0 %v108
    %v741 = vpop.f32.mrf.mxu0
    %v742 = vadd.f32 %v729, %v741
    %v743 = vpop.f32.mrf.mxu0
    %744 = vdwg.mxu0
    %745 = vmatpush.bf16.msra.mxu0 %v579
    %746 = vmatpush.bf16.msra.mxu0 %v577
    %747 = vmatpush.bf16.msra.mxu0 %v575
    %748 = vmatpush.bf16.msra.mxu0 %v573
    %749 = vmatpush.bf16.msra.mxu0 %v571
    %750 = vmatpush.bf16.msra.mxu0 %v569
    %751 = vmatpush.bf16.msra.mxu0 %v567
    %752 = vmatpush.bf16.msra.mxu0 %v565
    %753 = vmatmul.bf16.gmra.mxu0 %v109
    %v754 = vpop.f32.mrf.mxu0
    %v755 = vadd.f32 %v742, %v754
    %v756 = vpop.f32.mrf.mxu0
    %757 = vdwg.mxu0
    %758 = vmatpush.bf16.msra.mxu0 %v595
    %759 = vmatpush.bf16.msra.mxu0 %v593
    %760 = vmatpush.bf16.msra.mxu0 %v591
    %761 = vmatpush.bf16.msra.mxu0 %v589
    %762 = vmatpush.bf16.msra.mxu0 %v587
    %763 = vmatpush.bf16.msra.mxu0 %v585
    %764 = vmatpush.bf16.msra.mxu0 %v583
    %765 = vmatpush.bf16.msra.mxu0 %v581
    %766 = vmatmul.bf16.gmra.mxu0 %v110
    %v767 = vpop.f32.mrf.mxu0
    %v768 = vadd.f32 %v755, %v767
    %v769 = vpop.f32.mrf.mxu0
    %770 = vdwg.mxu0
    %771 = vmatpush.bf16.msra.mxu0 %v516
    %772 = vmatpush.bf16.msra.mxu0 %v514
    %773 = vmatpush.bf16.msra.mxu0 %v512
    %774 = vmatpush.bf16.msra.mxu0 %v510
    %775 = vmatpush.bf16.msra.mxu0 %v508
    %776 = vmatpush.bf16.msra.mxu0 %v506
    %777 = vmatpush.bf16.msra.mxu0 %v504
    %778 = vmatpush.bf16.msra.mxu0 %v502
    %779 = vmatmul.bf16.gmra.mxu0 %v105
    %v780 = vpop.f32.mrf.mxu0
    %v781 = vadd.f32 %v210, %v780
    %v782 = vpop.f32.mrf.mxu0
    %783 = vdwg.mxu0
    %784 = vmatpush.bf16.msra.mxu0 %v532
    %785 = vmatpush.bf16.msra.mxu0 %v530
    %786 = vmatpush.bf16.msra.mxu0 %v528
    %787 = vmatpush.bf16.msra.mxu0 %v526
    %788 = vmatpush.bf16.msra.mxu0 %v524
    %789 = vmatpush.bf16.msra.mxu0 %v522
    %790 = vmatpush.bf16.msra.mxu0 %v520
    %791 = vmatpush.bf16.msra.mxu0 %v518
    %792 = vmatmul.bf16.gmra.mxu0 %v106
    %v793 = vpop.f32.mrf.mxu0
    %v794 = vadd.f32 %v781, %v793
    %v795 = vpop.f32.mrf.mxu0
    %796 = vdwg.mxu0
    %797 = vmatpush.bf16.msra.mxu0 %v548
    %798 = vmatpush.bf16.msra.mxu0 %v546
    %799 = vmatpush.bf16.msra.mxu0 %v544
    %800 = vmatpush.bf16.msra.mxu0 %v542
    %801 = vmatpush.bf16.msra.mxu0 %v540
    %802 = vmatpush.bf16.msra.mxu0 %v538
    %803 = vmatpush.bf16.msra.mxu0 %v536
    %804 = vmatpush.bf16.msra.mxu0 %v534
    %805 = vmatmul.bf16.gmra.mxu0 %v107
    %v806 = vpop.f32.mrf.mxu0
    %v807 = vadd.f32 %v794, %v806
    %v808 = vpop.f32.mrf.mxu0
    %809 = vdwg.mxu0
    %810 = vmatpush.bf16.msra.mxu0 %v564
    %811 = vmatpush.bf16.msra.mxu0 %v562
    %812 = vmatpush.bf16.msra.mxu0 %v560
    %813 = vmatpush.bf16.msra.mxu0 %v558
    %814 = vmatpush.bf16.msra.mxu0 %v556
    %815 = vmatpush.bf16.msra.mxu0 %v554
    %816 = vmatpush.bf16.msra.mxu0 %v552
    %817 = vmatpush.bf16.msra.mxu0 %v550
    %818 = vmatmul.bf16.gmra.mxu0 %v108
    %v819 = vpop.f32.mrf.mxu0
    %v820 = vadd.f32 %v807, %v819
    %v821 = vpop.f32.mrf.mxu0
    %822 = vdwg.mxu0
    %823 = vmatpush.bf16.msra.mxu0 %v580
    %824 = vmatpush.bf16.msra.mxu0 %v578
    %825 = vmatpush.bf16.msra.mxu0 %v576
    %826 = vmatpush.bf16.msra.mxu0 %v574
    %827 = vmatpush.bf16.msra.mxu0 %v572
    %828 = vmatpush.bf16.msra.mxu0 %v570
    %829 = vmatpush.bf16.msra.mxu0 %v568
    %830 = vmatpush.bf16.msra.mxu0 %v566
    %831 = vmatmul.bf16.gmra.mxu0 %v109
    %v832 = vpop.f32.mrf.mxu0
    %v833 = vadd.f32 %v820, %v832
    %v834 = vpop.f32.mrf.mxu0
    %835 = vdwg.mxu0
    %836 = vmatpush.bf16.msra.mxu0 %v596
    %837 = vmatpush.bf16.msra.mxu0 %v594
    %838 = vmatpush.bf16.msra.mxu0 %v592
    %839 = vmatpush.bf16.msra.mxu0 %v590
    %840 = vmatpush.bf16.msra.mxu0 %v588
    %841 = vmatpush.bf16.msra.mxu0 %v586
    %842 = vmatpush.bf16.msra.mxu0 %v584
    %843 = vmatpush.bf16.msra.mxu0 %v582
    %844 = vmatmul.bf16.gmra.mxu0 %v110
    %v845 = vpop.f32.mrf.mxu0
    %v846 = vadd.f32 %v833, %v845
    %v847 = vpop.f32.mrf.mxu0
    %848 = vdwg.mxu0
    %v849 = vmax.f32 %v768, 0.0
    %v850 = vmax.f32 %v846, 0.0
    %v851 = vpack.c.bf16 %v849, %v849
    %v852 = vpack.c.bf16 %v850, %v850
    %v853 = vld [vmem:[#allocation8] sm:$0xff]
    %v854 = vld [vmem:[#allocation8 + $0x8] sm:$0xff]
    %v855 = vld [vmem:[#allocation8 + $0x10] sm:$0xff]
    %v856 = vld [vmem:[#allocation8 + $0x18] sm:$0xff]
    %v857 = vld [vmem:[#allocation8 + $0x20] sm:$0xff]
    %v858 = vld [vmem:[#allocation8 + $0x28] sm:$0xff]
    %v859 = vld [vmem:[#allocation8 + $0x30] sm:$0xff]
    %v860 = vld [vmem:[#allocation8 + $0x38] sm:$0xff]
    %v861 = vld [vmem:[#allocation8 + $0x40] sm:$0xff]
    %v862 = vld [vmem:[#allocation8 + $0x48] sm:$0xff]
    %v863 = vld [vmem:[#allocation8 + $0x50] sm:$0xff]
    %v864 = vld [vmem:[#allocation8 + $0x58] sm:$0xff]
    %v865 = vld [vmem:[#allocation8 + $0x60] sm:$0xff]
    %v866 = vld [vmem:[#allocation8 + $0x68] sm:$0xff]
    %v867 = vld [vmem:[#allocation8 + $0x70] sm:$0xff]
    %v868 = vld [vmem:[#allocation8 + $0x78] sm:$0xff]
    %v869 = vld [vmem:[#allocation8 + $0x80] sm:$0xff]
    %v870 = vld [vmem:[#allocation8 + $0x88] sm:$0xff]
    %v871 = vld [vmem:[#allocation8 + $0x90] sm:$0xff]
    %v872 = vld [vmem:[#allocation8 + $0x98] sm:$0xff]
    %v873 = vld [vmem:[#allocation8 + $0xa0] sm:$0xff]
    %v874 = vld [vmem:[#allocation8 + $0xa8] sm:$0xff]
    %v875 = vld [vmem:[#allocation8 + $0xb0] sm:$0xff]
    %v876 = vld [vmem:[#allocation8 + $0xb8] sm:$0xff]
    %v877 = vld [vmem:[#allocation8 + $0xc0] sm:$0xff]
    %v878 = vld [vmem:[#allocation8 + $0xc8] sm:$0xff]
    %v879 = vld [vmem:[#allocation8 + $0xd0] sm:$0xff]
    %v880 = vld [vmem:[#allocation8 + $0xd8] sm:$0xff]
    %v881 = vld [vmem:[#allocation8 + $0xe0] sm:$0xff]
    %v882 = vld [vmem:[#allocation8 + $0xe8] sm:$0xff]
    %v883 = vld [vmem:[#allocation8 + $0xf0] sm:$0xff]
    %v884 = vld [vmem:[#allocation8 + $0xf8] sm:$0xff]
    %v885 = vld [vmem:[#allocation10] sm:$0x3]
    %v887 = vperm.slane %v885, 0
    %v888 = vperm.slane %v885, 1
    %v923 = vunpack.c.l.b16 %v853
    %v924 = vunpack.c.h.b16 %v853
    %v925 = vunpack.c.l.b16 %v854
    %v926 = vunpack.c.h.b16 %v854
    %v927 = vunpack.c.l.b16 %v855
    %v928 = vunpack.c.h.b16 %v855
    %v929 = vunpack.c.l.b16 %v856
    %v930 = vunpack.c.h.b16 %v856
    %v931 = vunpack.c.l.b16 %v857
    %v932 = vunpack.c.h.b16 %v857
    %v933 = vunpack.c.l.b16 %v858
    %v934 = vunpack.c.h.b16 %v858
    %v935 = vunpack.c.l.b16 %v859
    %v936 = vunpack.c.h.b16 %v859
    %v937 = vunpack.c.l.b16 %v860
    %v938 = vunpack.c.h.b16 %v860
    %v939 = vunpack.c.l.b16 %v861
    %v940 = vunpack.c.h.b16 %v861
    %v941 = vunpack.c.l.b16 %v862
    %v942 = vunpack.c.h.b16 %v862
    %v943 = vunpack.c.l.b16 %v863
    %v944 = vunpack.c.h.b16 %v863
    %v945 = vunpack.c.l.b16 %v864
    %v946 = vunpack.c.h.b16 %v864
    %v947 = vunpack.c.l.b16 %v865
    %v948 = vunpack.c.h.b16 %v865
    %v949 = vunpack.c.l.b16 %v866
    %v950 = vunpack.c.h.b16 %v866
    %v951 = vunpack.c.l.b16 %v867
    %v952 = vunpack.c.h.b16 %v867
    %v953 = vunpack.c.l.b16 %v868
    %v954 = vunpack.c.h.b16 %v868
    %v955 = vunpack.c.l.b16 %v869
    %v956 = vunpack.c.h.b16 %v869
    %v957 = vunpack.c.l.b16 %v870
    %v958 = vunpack.c.h.b16 %v870
    %v959 = vunpack.c.l.b16 %v871
    %v960 = vunpack.c.h.b16 %v871
    %v961 = vunpack.c.l.b16 %v872
    %v962 = vunpack.c.h.b16 %v872
    %v963 = vunpack.c.l.b16 %v873
    %v964 = vunpack.c.h.b16 %v873
    %v965 = vunpack.c.l.b16 %v874
    %v966 = vunpack.c.h.b16 %v874
    %v967 = vunpack.c.l.b16 %v875
    %v968 = vunpack.c.h.b16 %v875
    %v969 = vunpack.c.l.b16 %v876
    %v970 = vunpack.c.h.b16 %v876
    %v971 = vunpack.c.l.b16 %v877
    %v972 = vunpack.c.h.b16 %v877
    %v973 = vunpack.c.l.b16 %v878
    %v974 = vunpack.c.h.b16 %v878
    %v975 = vunpack.c.l.b16 %v879
    %v976 = vunpack.c.h.b16 %v879
    %v977 = vunpack.c.l.b16 %v880
    %v978 = vunpack.c.h.b16 %v880
    %v979 = vunpack.c.l.b16 %v881
    %v980 = vunpack.c.h.b16 %v881
    %v981 = vunpack.c.l.b16 %v882
    %v982 = vunpack.c.h.b16 %v882
    %v983 = vunpack.c.l.b16 %v883
    %v984 = vunpack.c.h.b16 %v883
    %v985 = vunpack.c.l.b16 %v884
    %v986 = vunpack.c.h.b16 %v884
    %v987 = vpack.c.b16 %v925, %v923
    %v988 = vpack.c.b16 %v926, %v924
    %v989 = vpack.c.b16 %v929, %v927
    %v990 = vpack.c.b16 %v930, %v928
    %v991 = vpack.c.b16 %v933, %v931
    %v992 = vpack.c.b16 %v934, %v932
    %v993 = vpack.c.b16 %v937, %v935
    %v994 = vpack.c.b16 %v938, %v936
    %v995 = vpack.c.b16 %v941, %v939
    %v996 = vpack.c.b16 %v942, %v940
    %v997 = vpack.c.b16 %v945, %v943
    %v998 = vpack.c.b16 %v946, %v944
    %v999 = vpack.c.b16 %v949, %v947
    %v1000 = vpack.c.b16 %v950, %v948
    %v1001 = vpack.c.b16 %v953, %v951
    %v1002 = vpack.c.b16 %v954, %v952
    %v1003 = vpack.c.b16 %v957, %v955
    %v1004 = vpack.c.b16 %v958, %v956
    %v1005 = vpack.c.b16 %v961, %v959
    %v1006 = vpack.c.b16 %v962, %v960
    %v1007 = vpack.c.b16 %v965, %v963
    %v1008 = vpack.c.b16 %v966, %v964
    %v1009 = vpack.c.b16 %v969, %v967
    %v1010 = vpack.c.b16 %v970, %v968
    %v1011 = vpack.c.b16 %v973, %v971
    %v1012 = vpack.c.b16 %v974, %v972
    %v1013 = vpack.c.b16 %v977, %v975
    %v1014 = vpack.c.b16 %v978, %v976
    %v1015 = vpack.c.b16 %v981, %v979
    %v1016 = vpack.c.b16 %v982, %v980
    %v1017 = vpack.c.b16 %v985, %v983
    %v1018 = vpack.c.b16 %v986, %v984
    %1051 = vmatpush.bf16.msra.mxu0 %v1001
    %1052 = vmatpush.bf16.msra.mxu0 %v999
    %1053 = vmatpush.bf16.msra.mxu0 %v997
    %1054 = vmatpush.bf16.msra.mxu0 %v995
    %1055 = vmatpush.bf16.msra.mxu0 %v993
    %1056 = vmatpush.bf16.msra.mxu0 %v991
    %1057 = vmatpush.bf16.msra.mxu0 %v989
    %1058 = vmatpush.bf16.msra.mxu0 %v987
    %1059 = vmatmul.bf16.gmra.mxu0 %v851
    %v1060 = vpop.f32.mrf.mxu0
    %v1061 = vadd.f32 %v887, %v1060
    %v1062 = vpop.f32.mrf.mxu0
    %1063 = vdwg.mxu0
    %1064 = vmatpush.bf16.msra.mxu0 %v1017
    %1065 = vmatpush.bf16.msra.mxu0 %v1015
    %1066 = vmatpush.bf16.msra.mxu0 %v1013
    %1067 = vmatpush.bf16.msra.mxu0 %v1011
    %1068 = vmatpush.bf16.msra.mxu0 %v1009
    %1069 = vmatpush.bf16.msra.mxu0 %v1007
    %1070 = vmatpush.bf16.msra.mxu0 %v1005
    %1071 = vmatpush.bf16.msra.mxu0 %v1003
    %1072 = vmatmul.bf16.gmra.mxu0 %v852
    %v1073 = vpop.f32.mrf.mxu0
    %v1074 = vadd.f32 %v1061, %v1073
    %v1075 = vpop.f32.mrf.mxu0
    %1076 = vdwg.mxu0
    %1077 = vmatpush.bf16.msra.mxu0 %v1002
    %1078 = vmatpush.bf16.msra.mxu0 %v1000
    %1079 = vmatpush.bf16.msra.mxu0 %v998
    %1080 = vmatpush.bf16.msra.mxu0 %v996
    %1081 = vmatpush.bf16.msra.mxu0 %v994
    %1082 = vmatpush.bf16.msra.mxu0 %v992
    %1083 = vmatpush.bf16.msra.mxu0 %v990
    %1084 = vmatpush.bf16.msra.mxu0 %v988
    %1085 = vmatmul.bf16.gmra.mxu0 %v851
    %v1086 = vpop.f32.mrf.mxu0
    %v1087 = vadd.f32 %v888, %v1086
    %v1088 = vpop.f32.mrf.mxu0
    %1089 = vdwg.mxu0
    %1090 = vmatpush.bf16.msra.mxu0 %v1018
    %1091 = vmatpush.bf16.msra.mxu0 %v1016
    %1092 = vmatpush.bf16.msra.mxu0 %v1014
    %1093 = vmatpush.bf16.msra.mxu0 %v1012
    %1094 = vmatpush.bf16.msra.mxu0 %v1010
    %1095 = vmatpush.bf16.msra.mxu0 %v1008
    %1096 = vmatpush.bf16.msra.mxu0 %v1006
    %1097 = vmatpush.bf16.msra.mxu0 %v1004
    %1098 = vmatmul.bf16.gmra.mxu0 %v852
    %v1099 = vpop.f32.mrf.mxu0
    %v1100 = vadd.f32 %v1087, %v1099
    %v1101 = vpop.f32.mrf.mxu0
    %1102 = vdwg.mxu0
    %1103 = vst [vmem:[#allocation11] sm:$0xff] %v1074
    %1104 = vst [vmem:[#allocation11 + $0x8] sm:$0xff] %v1100
    %s1105 = scalar_lea.vmem [#allocation2], 48
    %v1106 = vld [vmem:[%s1105] sm:$0xff]
    %v1107 = vld [vmem:[%s1105 + $0x8] sm:$0xff]
    %v1108 = vld [vmem:[%s1105 + $0x10] sm:$0xff]
    %v1109 = vld [vmem:[%s1105 + $0x18] sm:$0xff]
    %v1110 = vld [vmem:[%s1105 + $0x20] sm:$0xff]
    %v1111 = vld [vmem:[%s1105 + $0x28] sm:$0xff]
    %v1112 = vpack.c.bf16 %v1106, %v1106
    %v1113 = vpack.c.bf16 %v1107, %v1107
    %v1114 = vpack.c.bf16 %v1108, %v1108
    %v1115 = vpack.c.bf16 %v1109, %v1109
    %v1116 = vpack.c.bf16 %v1110, %v1110
    %v1117 = vpack.c.bf16 %v1111, %v1111
    %s1118 = scalar_lea.vmem [#allocation5], 768
    %v1119 = vld [vmem:[%s1118] sm:$0xff]
    %v1120 = vld [vmem:[%s1118 + $0x8] sm:$0xff]
    %v1121 = vld [vmem:[%s1118 + $0x10] sm:$0xff]
    %v1122 = vld [vmem:[%s1118 + $0x18] sm:$0xff]
    %v1123 = vld [vmem:[%s1118 + $0x20] sm:$0xff]
    %v1124 = vld [vmem:[%s1118 + $0x28] sm:$0xff]
    %v1125 = vld [vmem:[%s1118 + $0x30] sm:$0xff]
    %v1126 = vld [vmem:[%s1118 + $0x38] sm:$0xff]
    %v1127 = vld [vmem:[%s1118 + $0x40] sm:$0xff]
    %v1128 = vld [vmem:[%s1118 + $0x48] sm:$0xff]
    %v1129 = vld [vmem:[%s1118 + $0x50] sm:$0xff]
    %v1130 = vld [vmem:[%s1118 + $0x58] sm:$0xff]
    %v1131 = vld [vmem:[%s1118 + $0x60] sm:$0xff]
    %v1132 = vld [vmem:[%s1118 + $0x68] sm:$0xff]
    %v1133 = vld [vmem:[%s1118 + $0x70] sm:$0xff]
    %v1134 = vld [vmem:[%s1118 + $0x78] sm:$0xff]
    %v1135 = vld [vmem:[%s1118 + $0x80] sm:$0xff]
    %v1136 = vld [vmem:[%s1118 + $0x88] sm:$0xff]
    %v1137 = vld [vmem:[%s1118 + $0x90] sm:$0xff]
    %v1138 = vld [vmem:[%s1118 + $0x98] sm:$0xff]
    %v1139 = vld [vmem:[%s1118 + $0xa0] sm:$0xff]
    %v1140 = vld [vmem:[%s1118 + $0xa8] sm:$0xff]
    %v1141 = vld [vmem:[%s1118 + $0xb0] sm:$0xff]
    %v1142 = vld [vmem:[%s1118 + $0xb8] sm:$0xff]
    %v1143 = vld [vmem:[%s1118 + $0xc0] sm:$0xff]
    %v1144 = vld [vmem:[%s1118 + $0xc8] sm:$0xff]
    %v1145 = vld [vmem:[%s1118 + $0xd0] sm:$0xff]
    %v1146 = vld [vmem:[%s1118 + $0xd8] sm:$0xff]
    %v1147 = vld [vmem:[%s1118 + $0xe0] sm:$0xff]
    %v1148 = vld [vmem:[%s1118 + $0xe8] sm:$0xff]
    %v1149 = vld [vmem:[%s1118 + $0xf0] sm:$0xff]
    %v1150 = vld [vmem:[%s1118 + $0xf8] sm:$0xff]
    %v1151 = vld [vmem:[%s1118 + $0x100] sm:$0xff]
    %v1152 = vld [vmem:[%s1118 + $0x108] sm:$0xff]
    %v1153 = vld [vmem:[%s1118 + $0x110] sm:$0xff]
    %v1154 = vld [vmem:[%s1118 + $0x118] sm:$0xff]
    %v1155 = vld [vmem:[%s1118 + $0x120] sm:$0xff]
    %v1156 = vld [vmem:[%s1118 + $0x128] sm:$0xff]
    %v1157 = vld [vmem:[%s1118 + $0x130] sm:$0xff]
    %v1158 = vld [vmem:[%s1118 + $0x138] sm:$0xff]
    %v1159 = vld [vmem:[%s1118 + $0x140] sm:$0xff]
    %v1160 = vld [vmem:[%s1118 + $0x148] sm:$0xff]
    %v1161 = vld [vmem:[%s1118 + $0x150] sm:$0xff]
    %v1162 = vld [vmem:[%s1118 + $0x158] sm:$0xff]
    %v1163 = vld [vmem:[%s1118 + $0x160] sm:$0xff]
    %v1164 = vld [vmem:[%s1118 + $0x168] sm:$0xff]
    %v1165 = vld [vmem:[%s1118 + $0x170] sm:$0xff]
    %v1166 = vld [vmem:[%s1118 + $0x178] sm:$0xff]
    %v1167 = vld [vmem:[%s1118 + $0x180] sm:$0xff]
    %v1168 = vld [vmem:[%s1118 + $0x188] sm:$0xff]
    %v1169 = vld [vmem:[%s1118 + $0x190] sm:$0xff]
    %v1170 = vld [vmem:[%s1118 + $0x198] sm:$0xff]
    %v1171 = vld [vmem:[%s1118 + $0x1a0] sm:$0xff]
    %v1172 = vld [vmem:[%s1118 + $0x1a8] sm:$0xff]
    %v1173 = vld [vmem:[%s1118 + $0x1b0] sm:$0xff]
    %v1174 = vld [vmem:[%s1118 + $0x1b8] sm:$0xff]
    %v1175 = vld [vmem:[%s1118 + $0x1c0] sm:$0xff]
    %v1176 = vld [vmem:[%s1118 + $0x1c8] sm:$0xff]
    %v1177 = vld [vmem:[%s1118 + $0x1d0] sm:$0xff]
    %v1178 = vld [vmem:[%s1118 + $0x1d8] sm:$0xff]
    %v1179 = vld [vmem:[%s1118 + $0x1e0] sm:$0xff]
    %v1180 = vld [vmem:[%s1118 + $0x1e8] sm:$0xff]
    %v1181 = vld [vmem:[%s1118 + $0x1f0] sm:$0xff]
    %v1182 = vld [vmem:[%s1118 + $0x1f8] sm:$0xff]
    %v1183 = vld [vmem:[%s1118 + $0x200] sm:$0xff]
    %v1184 = vld [vmem:[%s1118 + $0x208] sm:$0xff]
    %v1185 = vld [vmem:[%s1118 + $0x210] sm:$0xff]
    %v1186 = vld [vmem:[%s1118 + $0x218] sm:$0xff]
    %v1187 = vld [vmem:[%s1118 + $0x220] sm:$0xff]
    %v1188 = vld [vmem:[%s1118 + $0x228] sm:$0xff]
    %v1189 = vld [vmem:[%s1118 + $0x230] sm:$0xff]
    %v1190 = vld [vmem:[%s1118 + $0x238] sm:$0xff]
    %v1191 = vld [vmem:[%s1118 + $0x240] sm:$0xff]
    %v1192 = vld [vmem:[%s1118 + $0x248] sm:$0xff]
    %v1193 = vld [vmem:[%s1118 + $0x250] sm:$0xff]
    %v1194 = vld [vmem:[%s1118 + $0x258] sm:$0xff]
    %v1195 = vld [vmem:[%s1118 + $0x260] sm:$0xff]
    %v1196 = vld [vmem:[%s1118 + $0x268] sm:$0xff]
    %v1197 = vld [vmem:[%s1118 + $0x270] sm:$0xff]
    %v1198 = vld [vmem:[%s1118 + $0x278] sm:$0xff]
    %v1199 = vld [vmem:[%s1118 + $0x280] sm:$0xff]
    %v1200 = vld [vmem:[%s1118 + $0x288] sm:$0xff]
    %v1201 = vld [vmem:[%s1118 + $0x290] sm:$0xff]
    %v1202 = vld [vmem:[%s1118 + $0x298] sm:$0xff]
    %v1203 = vld [vmem:[%s1118 + $0x2a0] sm:$0xff]
    %v1204 = vld [vmem:[%s1118 + $0x2a8] sm:$0xff]
    %v1205 = vld [vmem:[%s1118 + $0x2b0] sm:$0xff]
    %v1206 = vld [vmem:[%s1118 + $0x2b8] sm:$0xff]
    %v1207 = vld [vmem:[%s1118 + $0x2c0] sm:$0xff]
    %v1208 = vld [vmem:[%s1118 + $0x2c8] sm:$0xff]
    %v1209 = vld [vmem:[%s1118 + $0x2d0] sm:$0xff]
    %v1210 = vld [vmem:[%s1118 + $0x2d8] sm:$0xff]
    %v1211 = vld [vmem:[%s1118 + $0x2e0] sm:$0xff]
    %v1212 = vld [vmem:[%s1118 + $0x2e8] sm:$0xff]
    %v1213 = vld [vmem:[%s1118 + $0x2f0] sm:$0xff]
    %v1214 = vld [vmem:[%s1118 + $0x2f8] sm:$0xff]
    %s1215 = scalar_lea.vmem [#allocation7], 2
    %v1216 = vld [vmem:[%s1215] sm:$0x3]
    %v1218 = vperm.slane %v1216, 0
    %v1219 = vperm.slane %v1216, 1
    %v1318 = vunpack.c.l.b16 %v1119
    %v1319 = vunpack.c.h.b16 %v1119
    %v1320 = vunpack.c.l.b16 %v1120
    %v1321 = vunpack.c.h.b16 %v1120
    %v1322 = vunpack.c.l.b16 %v1121
    %v1323 = vunpack.c.h.b16 %v1121
    %v1324 = vunpack.c.l.b16 %v1122
    %v1325 = vunpack.c.h.b16 %v1122
    %v1326 = vunpack.c.l.b16 %v1123
    %v1327 = vunpack.c.h.b16 %v1123
    %v1328 = vunpack.c.l.b16 %v1124
    %v1329 = vunpack.c.h.b16 %v1124
    %v1330 = vunpack.c.l.b16 %v1125
    %v1331 = vunpack.c.h.b16 %v1125
    %v1332 = vunpack.c.l.b16 %v1126
    %v1333 = vunpack.c.h.b16 %v1126
    %v1334 = vunpack.c.l.b16 %v1127
    %v1335 = vunpack.c.h.b16 %v1127
    %v1336 = vunpack.c.l.b16 %v1128
    %v1337 = vunpack.c.h.b16 %v1128
    %v1338 = vunpack.c.l.b16 %v1129
    %v1339 = vunpack.c.h.b16 %v1129
    %v1340 = vunpack.c.l.b16 %v1130
    %v1341 = vunpack.c.h.b16 %v1130
    %v1342 = vunpack.c.l.b16 %v1131
    %v1343 = vunpack.c.h.b16 %v1131
    %v1344 = vunpack.c.l.b16 %v1132
    %v1345 = vunpack.c.h.b16 %v1132
    %v1346 = vunpack.c.l.b16 %v1133
    %v1347 = vunpack.c.h.b16 %v1133
    %v1348 = vunpack.c.l.b16 %v1134
    %v1349 = vunpack.c.h.b16 %v1134
    %v1350 = vunpack.c.l.b16 %v1135
    %v1351 = vunpack.c.h.b16 %v1135
    %v1352 = vunpack.c.l.b16 %v1136
    %v1353 = vunpack.c.h.b16 %v1136
    %v1354 = vunpack.c.l.b16 %v1137
    %v1355 = vunpack.c.h.b16 %v1137
    %v1356 = vunpack.c.l.b16 %v1138
    %v1357 = vunpack.c.h.b16 %v1138
    %v1358 = vunpack.c.l.b16 %v1139
    %v1359 = vunpack.c.h.b16 %v1139
    %v1360 = vunpack.c.l.b16 %v1140
    %v1361 = vunpack.c.h.b16 %v1140
    %v1362 = vunpack.c.l.b16 %v1141
    %v1363 = vunpack.c.h.b16 %v1141
    %v1364 = vunpack.c.l.b16 %v1142
    %v1365 = vunpack.c.h.b16 %v1142
    %v1366 = vunpack.c.l.b16 %v1143
    %v1367 = vunpack.c.h.b16 %v1143
    %v1368 = vunpack.c.l.b16 %v1144
    %v1369 = vunpack.c.h.b16 %v1144
    %v1370 = vunpack.c.l.b16 %v1145
    %v1371 = vunpack.c.h.b16 %v1145
    %v1372 = vunpack.c.l.b16 %v1146
    %v1373 = vunpack.c.h.b16 %v1146
    %v1374 = vunpack.c.l.b16 %v1147
    %v1375 = vunpack.c.h.b16 %v1147
    %v1376 = vunpack.c.l.b16 %v1148
    %v1377 = vunpack.c.h.b16 %v1148
    %v1378 = vunpack.c.l.b16 %v1149
    %v1379 = vunpack.c.h.b16 %v1149
    %v1380 = vunpack.c.l.b16 %v1150
    %v1381 = vunpack.c.h.b16 %v1150
    %v1382 = vunpack.c.l.b16 %v1151
    %v1383 = vunpack.c.h.b16 %v1151
    %v1384 = vunpack.c.l.b16 %v1152
    %v1385 = vunpack.c.h.b16 %v1152
    %v1386 = vunpack.c.l.b16 %v1153
    %v1387 = vunpack.c.h.b16 %v1153
    %v1388 = vunpack.c.l.b16 %v1154
    %v1389 = vunpack.c.h.b16 %v1154
    %v1390 = vunpack.c.l.b16 %v1155
    %v1391 = vunpack.c.h.b16 %v1155
    %v1392 = vunpack.c.l.b16 %v1156
    %v1393 = vunpack.c.h.b16 %v1156
    %v1394 = vunpack.c.l.b16 %v1157
    %v1395 = vunpack.c.h.b16 %v1157
    %v1396 = vunpack.c.l.b16 %v1158
    %v1397 = vunpack.c.h.b16 %v1158
    %v1398 = vunpack.c.l.b16 %v1159
    %v1399 = vunpack.c.h.b16 %v1159
    %v1400 = vunpack.c.l.b16 %v1160
    %v1401 = vunpack.c.h.b16 %v1160
    %v1402 = vunpack.c.l.b16 %v1161
    %v1403 = vunpack.c.h.b16 %v1161
    %v1404 = vunpack.c.l.b16 %v1162
    %v1405 = vunpack.c.h.b16 %v1162
    %v1406 = vunpack.c.l.b16 %v1163
    %v1407 = vunpack.c.h.b16 %v1163
    %v1408 = vunpack.c.l.b16 %v1164
    %v1409 = vunpack.c.h.b16 %v1164
    %v1410 = vunpack.c.l.b16 %v1165
    %v1411 = vunpack.c.h.b16 %v1165
    %v1412 = vunpack.c.l.b16 %v1166
    %v1413 = vunpack.c.h.b16 %v1166
    %v1414 = vunpack.c.l.b16 %v1167
    %v1415 = vunpack.c.h.b16 %v1167
    %v1416 = vunpack.c.l.b16 %v1168
    %v1417 = vunpack.c.h.b16 %v1168
    %v1418 = vunpack.c.l.b16 %v1169
    %v1419 = vunpack.c.h.b16 %v1169
    %v1420 = vunpack.c.l.b16 %v1170
    %v1421 = vunpack.c.h.b16 %v1170
    %v1422 = vunpack.c.l.b16 %v1171
    %v1423 = vunpack.c.h.b16 %v1171
    %v1424 = vunpack.c.l.b16 %v1172
    %v1425 = vunpack.c.h.b16 %v1172
    %v1426 = vunpack.c.l.b16 %v1173
    %v1427 = vunpack.c.h.b16 %v1173
    %v1428 = vunpack.c.l.b16 %v1174
    %v1429 = vunpack.c.h.b16 %v1174
    %v1430 = vunpack.c.l.b16 %v1175
    %v1431 = vunpack.c.h.b16 %v1175
    %v1432 = vunpack.c.l.b16 %v1176
    %v1433 = vunpack.c.h.b16 %v1176
    %v1434 = vunpack.c.l.b16 %v1177
    %v1435 = vunpack.c.h.b16 %v1177
    %v1436 = vunpack.c.l.b16 %v1178
    %v1437 = vunpack.c.h.b16 %v1178
    %v1438 = vunpack.c.l.b16 %v1179
    %v1439 = vunpack.c.h.b16 %v1179
    %v1440 = vunpack.c.l.b16 %v1180
    %v1441 = vunpack.c.h.b16 %v1180
    %v1442 = vunpack.c.l.b16 %v1181
    %v1443 = vunpack.c.h.b16 %v1181
    %v1444 = vunpack.c.l.b16 %v1182
    %v1445 = vunpack.c.h.b16 %v1182
    %v1446 = vunpack.c.l.b16 %v1183
    %v1447 = vunpack.c.h.b16 %v1183
    %v1448 = vunpack.c.l.b16 %v1184
    %v1449 = vunpack.c.h.b16 %v1184
    %v1450 = vunpack.c.l.b16 %v1185
    %v1451 = vunpack.c.h.b16 %v1185
    %v1452 = vunpack.c.l.b16 %v1186
    %v1453 = vunpack.c.h.b16 %v1186
    %v1454 = vunpack.c.l.b16 %v1187
    %v1455 = vunpack.c.h.b16 %v1187
    %v1456 = vunpack.c.l.b16 %v1188
    %v1457 = vunpack.c.h.b16 %v1188
    %v1458 = vunpack.c.l.b16 %v1189
    %v1459 = vunpack.c.h.b16 %v1189
    %v1460 = vunpack.c.l.b16 %v1190
    %v1461 = vunpack.c.h.b16 %v1190
    %v1462 = vunpack.c.l.b16 %v1191
    %v1463 = vunpack.c.h.b16 %v1191
    %v1464 = vunpack.c.l.b16 %v1192
    %v1465 = vunpack.c.h.b16 %v1192
    %v1466 = vunpack.c.l.b16 %v1193
    %v1467 = vunpack.c.h.b16 %v1193
    %v1468 = vunpack.c.l.b16 %v1194
    %v1469 = vunpack.c.h.b16 %v1194
    %v1470 = vunpack.c.l.b16 %v1195
    %v1471 = vunpack.c.h.b16 %v1195
    %v1472 = vunpack.c.l.b16 %v1196
    %v1473 = vunpack.c.h.b16 %v1196
    %v1474 = vunpack.c.l.b16 %v1197
    %v1475 = vunpack.c.h.b16 %v1197
    %v1476 = vunpack.c.l.b16 %v1198
    %v1477 = vunpack.c.h.b16 %v1198
    %v1478 = vunpack.c.l.b16 %v1199
    %v1479 = vunpack.c.h.b16 %v1199
    %v1480 = vunpack.c.l.b16 %v1200
    %v1481 = vunpack.c.h.b16 %v1200
    %v1482 = vunpack.c.l.b16 %v1201
    %v1483 = vunpack.c.h.b16 %v1201
    %v1484 = vunpack.c.l.b16 %v1202
    %v1485 = vunpack.c.h.b16 %v1202
    %v1486 = vunpack.c.l.b16 %v1203
    %v1487 = vunpack.c.h.b16 %v1203
    %v1488 = vunpack.c.l.b16 %v1204
    %v1489 = vunpack.c.h.b16 %v1204
    %v1490 = vunpack.c.l.b16 %v1205
    %v1491 = vunpack.c.h.b16 %v1205
    %v1492 = vunpack.c.l.b16 %v1206
    %v1493 = vunpack.c.h.b16 %v1206
    %v1494 = vunpack.c.l.b16 %v1207
    %v1495 = vunpack.c.h.b16 %v1207
    %v1496 = vunpack.c.l.b16 %v1208
    %v1497 = vunpack.c.h.b16 %v1208
    %v1498 = vunpack.c.l.b16 %v1209
    %v1499 = vunpack.c.h.b16 %v1209
    %v1500 = vunpack.c.l.b16 %v1210
    %v1501 = vunpack.c.h.b16 %v1210
    %v1502 = vunpack.c.l.b16 %v1211
    %v1503 = vunpack.c.h.b16 %v1211
    %v1504 = vunpack.c.l.b16 %v1212
    %v1505 = vunpack.c.h.b16 %v1212
    %v1506 = vunpack.c.l.b16 %v1213
    %v1507 = vunpack.c.h.b16 %v1213
    %v1508 = vunpack.c.l.b16 %v1214
    %v1509 = vunpack.c.h.b16 %v1214
    %v1510 = vpack.c.b16 %v1320, %v1318
    %v1511 = vpack.c.b16 %v1321, %v1319
    %v1512 = vpack.c.b16 %v1324, %v1322
    %v1513 = vpack.c.b16 %v1325, %v1323
    %v1514 = vpack.c.b16 %v1328, %v1326
    %v1515 = vpack.c.b16 %v1329, %v1327
    %v1516 = vpack.c.b16 %v1332, %v1330
    %v1517 = vpack.c.b16 %v1333, %v1331
    %v1518 = vpack.c.b16 %v1336, %v1334
    %v1519 = vpack.c.b16 %v1337, %v1335
    %v1520 = vpack.c.b16 %v1340, %v1338
    %v1521 = vpack.c.b16 %v1341, %v1339
    %v1522 = vpack.c.b16 %v1344, %v1342
    %v1523 = vpack.c.b16 %v1345, %v1343
    %v1524 = vpack.c.b16 %v1348, %v1346
    %v1525 = vpack.c.b16 %v1349, %v1347
    %v1526 = vpack.c.b16 %v1352, %v1350
    %v1527 = vpack.c.b16 %v1353, %v1351
    %v1528 = vpack.c.b16 %v1356, %v1354
    %v1529 = vpack.c.b16 %v1357, %v1355
    %v1530 = vpack.c.b16 %v1360, %v1358
    %v1531 = vpack.c.b16 %v1361, %v1359
    %v1532 = vpack.c.b16 %v1364, %v1362
    %v1533 = vpack.c.b16 %v1365, %v1363
    %v1534 = vpack.c.b16 %v1368, %v1366
    %v1535 = vpack.c.b16 %v1369, %v1367
    %v1536 = vpack.c.b16 %v1372, %v1370
    %v1537 = vpack.c.b16 %v1373, %v1371
    %v1538 = vpack.c.b16 %v1376, %v1374
    %v1539 = vpack.c.b16 %v1377, %v1375
    %v1540 = vpack.c.b16 %v1380, %v1378
    %v1541 = vpack.c.b16 %v1381, %v1379
    %v1542 = vpack.c.b16 %v1384, %v1382
    %v1543 = vpack.c.b16 %v1385, %v1383
    %v1544 = vpack.c.b16 %v1388, %v1386
    %v1545 = vpack.c.b16 %v1389, %v1387
    %v1546 = vpack.c.b16 %v1392, %v1390
    %v1547 = vpack.c.b16 %v1393, %v1391
    %v1548 = vpack.c.b16 %v1396, %v1394
    %v1549 = vpack.c.b16 %v1397, %v1395
    %v1550 = vpack.c.b16 %v1400, %v1398
    %v1551 = vpack.c.b16 %v1401, %v1399
    %v1552 = vpack.c.b16 %v1404, %v1402
    %v1553 = vpack.c.b16 %v1405, %v1403
    %v1554 = vpack.c.b16 %v1408, %v1406
    %v1555 = vpack.c.b16 %v1409, %v1407
    %v1556 = vpack.c.b16 %v1412, %v1410
    %v1557 = vpack.c.b16 %v1413, %v1411
    %v1558 = vpack.c.b16 %v1416, %v1414
    %v1559 = vpack.c.b16 %v1417, %v1415
    %v1560 = vpack.c.b16 %v1420, %v1418
    %v1561 = vpack.c.b16 %v1421, %v1419
    %v1562 = vpack.c.b16 %v1424, %v1422
    %v1563 = vpack.c.b16 %v1425, %v1423
    %v1564 = vpack.c.b16 %v1428, %v1426
    %v1565 = vpack.c.b16 %v1429, %v1427
    %v1566 = vpack.c.b16 %v1432, %v1430
    %v1567 = vpack.c.b16 %v1433, %v1431
    %v1568 = vpack.c.b16 %v1436, %v1434
    %v1569 = vpack.c.b16 %v1437, %v1435
    %v1570 = vpack.c.b16 %v1440, %v1438
    %v1571 = vpack.c.b16 %v1441, %v1439
    %v1572 = vpack.c.b16 %v1444, %v1442
    %v1573 = vpack.c.b16 %v1445, %v1443
    %v1574 = vpack.c.b16 %v1448, %v1446
    %v1575 = vpack.c.b16 %v1449, %v1447
    %v1576 = vpack.c.b16 %v1452, %v1450
    %v1577 = vpack.c.b16 %v1453, %v1451
    %v1578 = vpack.c.b16 %v1456, %v1454
    %v1579 = vpack.c.b16 %v1457, %v1455
    %v1580 = vpack.c.b16 %v1460, %v1458
    %v1581 = vpack.c.b16 %v1461, %v1459
    %v1582 = vpack.c.b16 %v1464, %v1462
    %v1583 = vpack.c.b16 %v1465, %v1463
    %v1584 = vpack.c.b16 %v1468, %v1466
    %v1585 = vpack.c.b16 %v1469, %v1467
    %v1586 = vpack.c.b16 %v1472, %v1470
    %v1587 = vpack.c.b16 %v1473, %v1471
    %v1588 = vpack.c.b16 %v1476, %v1474
    %v1589 = vpack.c.b16 %v1477, %v1475
    %v1590 = vpack.c.b16 %v1480, %v1478
    %v1591 = vpack.c.b16 %v1481, %v1479
    %v1592 = vpack.c.b16 %v1484, %v1482
    %v1593 = vpack.c.b16 %v1485, %v1483
    %v1594 = vpack.c.b16 %v1488, %v1486
    %v1595 = vpack.c.b16 %v1489, %v1487
    %v1596 = vpack.c.b16 %v1492, %v1490
    %v1597 = vpack.c.b16 %v1493, %v1491
    %v1598 = vpack.c.b16 %v1496, %v1494
    %v1599 = vpack.c.b16 %v1497, %v1495
    %v1600 = vpack.c.b16 %v1500, %v1498
    %v1601 = vpack.c.b16 %v1501, %v1499
    %v1602 = vpack.c.b16 %v1504, %v1502
    %v1603 = vpack.c.b16 %v1505, %v1503
    %v1604 = vpack.c.b16 %v1508, %v1506
    %v1605 = vpack.c.b16 %v1509, %v1507
    %1702 = vmatpush.bf16.msra.mxu0 %v1524
    %1703 = vmatpush.bf16.msra.mxu0 %v1522
    %1704 = vmatpush.bf16.msra.mxu0 %v1520
    %1705 = vmatpush.bf16.msra.mxu0 %v1518
    %1706 = vmatpush.bf16.msra.mxu0 %v1516
    %1707 = vmatpush.bf16.msra.mxu0 %v1514
    %1708 = vmatpush.bf16.msra.mxu0 %v1512
    %1709 = vmatpush.bf16.msra.mxu0 %v1510
    %1710 = vmatmul.bf16.gmra.mxu0 %v1112
    %v1711 = vpop.f32.mrf.mxu0
    %v1712 = vadd.f32 %v1218, %v1711
    %v1713 = vpop.f32.mrf.mxu0
    %1714 = vdwg.mxu0
    %1715 = vmatpush.bf16.msra.mxu0 %v1540
    %1716 = vmatpush.bf16.msra.mxu0 %v1538
    %1717 = vmatpush.bf16.msra.mxu0 %v1536
    %1718 = vmatpush.bf16.msra.mxu0 %v1534
    %1719 = vmatpush.bf16.msra.mxu0 %v1532
    %1720 = vmatpush.bf16.msra.mxu0 %v1530
    %1721 = vmatpush.bf16.msra.mxu0 %v1528
    %1722 = vmatpush.bf16.msra.mxu0 %v1526
    %1723 = vmatmul.bf16.gmra.mxu0 %v1113
    %v1724 = vpop.f32.mrf.mxu0
    %v1725 = vadd.f32 %v1712, %v1724
    %v1726 = vpop.f32.mrf.mxu0
    %1727 = vdwg.mxu0
    %1728 = vmatpush.bf16.msra.mxu0 %v1556
    %1729 = vmatpush.bf16.msra.mxu0 %v1554
    %1730 = vmatpush.bf16.msra.mxu0 %v1552
    %1731 = vmatpush.bf16.msra.mxu0 %v1550
    %1732 = vmatpush.bf16.msra.mxu0 %v1548
    %1733 = vmatpush.bf16.msra.mxu0 %v1546
    %1734 = vmatpush.bf16.msra.mxu0 %v1544
    %1735 = vmatpush.bf16.msra.mxu0 %v1542
    %1736 = vmatmul.bf16.gmra.mxu0 %v1114
    %v1737 = vpop.f32.mrf.mxu0
    %v1738 = vadd.f32 %v1725, %v1737
    %v1739 = vpop.f32.mrf.mxu0
    %1740 = vdwg.mxu0
    %1741 = vmatpush.bf16.msra.mxu0 %v1572
    %1742 = vmatpush.bf16.msra.mxu0 %v1570
    %1743 = vmatpush.bf16.msra.mxu0 %v1568
    %1744 = vmatpush.bf16.msra.mxu0 %v1566
    %1745 = vmatpush.bf16.msra.mxu0 %v1564
    %1746 = vmatpush.bf16.msra.mxu0 %v1562
    %1747 = vmatpush.bf16.msra.mxu0 %v1560
    %1748 = vmatpush.bf16.msra.mxu0 %v1558
    %1749 = vmatmul.bf16.gmra.mxu0 %v1115
    %v1750 = vpop.f32.mrf.mxu0
    %v1751 = vadd.f32 %v1738, %v1750
    %v1752 = vpop.f32.mrf.mxu0
    %1753 = vdwg.mxu0
    %1754 = vmatpush.bf16.msra.mxu0 %v1588
    %1755 = vmatpush.bf16.msra.mxu0 %v1586
    %1756 = vmatpush.bf16.msra.mxu0 %v1584
    %1757 = vmatpush.bf16.msra.mxu0 %v1582
    %1758 = vmatpush.bf16.msra.mxu0 %v1580
    %1759 = vmatpush.bf16.msra.mxu0 %v1578
    %1760 = vmatpush.bf16.msra.mxu0 %v1576
    %1761 = vmatpush.bf16.msra.mxu0 %v1574
    %1762 = vmatmul.bf16.gmra.mxu0 %v1116
    %v1763 = vpop.f32.mrf.mxu0
    %v1764 = vadd.f32 %v1751, %v1763
    %v1765 = vpop.f32.mrf.mxu0
    %1766 = vdwg.mxu0
    %1767 = vmatpush.bf16.msra.mxu0 %v1604
    %1768 = vmatpush.bf16.msra.mxu0 %v1602
    %1769 = vmatpush.bf16.msra.mxu0 %v1600
    %1770 = vmatpush.bf16.msra.mxu0 %v1598
    %1771 = vmatpush.bf16.msra.mxu0 %v1596
    %1772 = vmatpush.bf16.msra.mxu0 %v1594
    %1773 = vmatpush.bf16.msra.mxu0 %v1592
    %1774 = vmatpush.bf16.msra.mxu0 %v1590
    %1775 = vmatmul.bf16.gmra.mxu0 %v1117
    %v1776 = vpop.f32.mrf.mxu0
    %v1777 = vadd.f32 %v1764, %v1776
    %v1778 = vpop.f32.mrf.mxu0
    %1779 = vdwg.mxu0
    %1780 = vmatpush.bf16.msra.mxu0 %v1525
    %1781 = vmatpush.bf16.msra.mxu0 %v1523
    %1782 = vmatpush.bf16.msra.mxu0 %v1521
    %1783 = vmatpush.bf16.msra.mxu0 %v1519
    %1784 = vmatpush.bf16.msra.mxu0 %v1517
    %1785 = vmatpush.bf16.msra.mxu0 %v1515
    %1786 = vmatpush.bf16.msra.mxu0 %v1513
    %1787 = vmatpush.bf16.msra.mxu0 %v1511
    %1788 = vmatmul.bf16.gmra.mxu0 %v1112
    %v1789 = vpop.f32.mrf.mxu0
    %v1790 = vadd.f32 %v1219, %v1789
    %v1791 = vpop.f32.mrf.mxu0
    %1792 = vdwg.mxu0
    %1793 = vmatpush.bf16.msra.mxu0 %v1541
    %1794 = vmatpush.bf16.msra.mxu0 %v1539
    %1795 = vmatpush.bf16.msra.mxu0 %v1537
    %1796 = vmatpush.bf16.msra.mxu0 %v1535
    %1797 = vmatpush.bf16.msra.mxu0 %v1533
    %1798 = vmatpush.bf16.msra.mxu0 %v1531
    %1799 = vmatpush.bf16.msra.mxu0 %v1529
    %1800 = vmatpush.bf16.msra.mxu0 %v1527
    %1801 = vmatmul.bf16.gmra.mxu0 %v1113
    %v1802 = vpop.f32.mrf.mxu0
    %v1803 = vadd.f32 %v1790, %v1802
    %v1804 = vpop.f32.mrf.mxu0
    %1805 = vdwg.mxu0
    %1806 = vmatpush.bf16.msra.mxu0 %v1557
    %1807 = vmatpush.bf16.msra.mxu0 %v1555
    %1808 = vmatpush.bf16.msra.mxu0 %v1553
    %1809 = vmatpush.bf16.msra.mxu0 %v1551
    %1810 = vmatpush.bf16.msra.mxu0 %v1549
    %1811 = vmatpush.bf16.msra.mxu0 %v1547
    %1812 = vmatpush.bf16.msra.mxu0 %v1545
    %1813 = vmatpush.bf16.msra.mxu0 %v1543
    %1814 = vmatmul.bf16.gmra.mxu0 %v1114
    %v1815 = vpop.f32.mrf.mxu0
    %v1816 = vadd.f32 %v1803, %v1815
    %v1817 = vpop.f32.mrf.mxu0
    %1818 = vdwg.mxu0
    %1819 = vmatpush.bf16.msra.mxu0 %v1573
    %1820 = vmatpush.bf16.msra.mxu0 %v1571
    %1821 = vmatpush.bf16.msra.mxu0 %v1569
    %1822 = vmatpush.bf16.msra.mxu0 %v1567
    %1823 = vmatpush.bf16.msra.mxu0 %v1565
    %1824 = vmatpush.bf16.msra.mxu0 %v1563
    %1825 = vmatpush.bf16.msra.mxu0 %v1561
    %1826 = vmatpush.bf16.msra.mxu0 %v1559
    %1827 = vmatmul.bf16.gmra.mxu0 %v1115
    %v1828 = vpop.f32.mrf.mxu0
    %v1829 = vadd.f32 %v1816, %v1828
    %v1830 = vpop.f32.mrf.mxu0
    %1831 = vdwg.mxu0
    %1832 = vmatpush.bf16.msra.mxu0 %v1589
    %1833 = vmatpush.bf16.msra.mxu0 %v1587
    %1834 = vmatpush.bf16.msra.mxu0 %v1585
    %1835 = vmatpush.bf16.msra.mxu0 %v1583
    %1836 = vmatpush.bf16.msra.mxu0 %v1581
    %1837 = vmatpush.bf16.msra.mxu0 %v1579
    %1838 = vmatpush.bf16.msra.mxu0 %v1577
    %1839 = vmatpush.bf16.msra.mxu0 %v1575
    %1840 = vmatmul.bf16.gmra.mxu0 %v1116
    %v1841 = vpop.f32.mrf.mxu0
    %v1842 = vadd.f32 %v1829, %v1841
    %v1843 = vpop.f32.mrf.mxu0
    %1844 = vdwg.mxu0
    %1845 = vmatpush.bf16.msra.mxu0 %v1605
    %1846 = vmatpush.bf16.msra.mxu0 %v1603
    %1847 = vmatpush.bf16.msra.mxu0 %v1601
    %1848 = vmatpush.bf16.msra.mxu0 %v1599
    %1849 = vmatpush.bf16.msra.mxu0 %v1597
    %1850 = vmatpush.bf16.msra.mxu0 %v1595
    %1851 = vmatpush.bf16.msra.mxu0 %v1593
    %1852 = vmatpush.bf16.msra.mxu0 %v1591
    %1853 = vmatmul.bf16.gmra.mxu0 %v1117
    %v1854 = vpop.f32.mrf.mxu0
    %v1855 = vadd.f32 %v1842, %v1854
    %v1856 = vpop.f32.mrf.mxu0
    %1857 = vdwg.mxu0
    %v1858 = vmax.f32 %v1777, 0.0
    %v1859 = vmax.f32 %v1855, 0.0
    %v1860 = vpack.c.bf16 %v1858, %v1858
    %v1861 = vpack.c.bf16 %v1859, %v1859
    %s1862 = scalar_lea.vmem [#allocation8], 256
    %v1863 = vld [vmem:[%s1862] sm:$0xff]
    %v1864 = vld [vmem:[%s1862 + $0x8] sm:$0xff]
    %v1865 = vld [vmem:[%s1862 + $0x10] sm:$0xff]
    %v1866 = vld [vmem:[%s1862 + $0x18] sm:$0xff]
    %v1867 = vld [vmem:[%s1862 + $0x20] sm:$0xff]
    %v1868 = vld [vmem:[%s1862 + $0x28] sm:$0xff]
    %v1869 = vld [vmem:[%s1862 + $0x30] sm:$0xff]
    %v1870 = vld [vmem:[%s1862 + $0x38] sm:$0xff]
    %v1871 = vld [vmem:[%s1862 + $0x40] sm:$0xff]
    %v1872 = vld [vmem:[%s1862 + $0x48] sm:$0xff]
    %v1873 = vld [vmem:[%s1862 + $0x50] sm:$0xff]
    %v1874 = vld [vmem:[%s1862 + $0x58] sm:$0xff]
    %v1875 = vld [vmem:[%s1862 + $0x60] sm:$0xff]
    %v1876 = vld [vmem:[%s1862 + $0x68] sm:$0xff]
    %v1877 = vld [vmem:[%s1862 + $0x70] sm:$0xff]
    %v1878 = vld [vmem:[%s1862 + $0x78] sm:$0xff]
    %v1879 = vld [vmem:[%s1862 + $0x80] sm:$0xff]
    %v1880 = vld [vmem:[%s1862 + $0x88] sm:$0xff]
    %v1881 = vld [vmem:[%s1862 + $0x90] sm:$0xff]
    %v1882 = vld [vmem:[%s1862 + $0x98] sm:$0xff]
    %v1883 = vld [vmem:[%s1862 + $0xa0] sm:$0xff]
    %v1884 = vld [vmem:[%s1862 + $0xa8] sm:$0xff]
    %v1885 = vld [vmem:[%s1862 + $0xb0] sm:$0xff]
    %v1886 = vld [vmem:[%s1862 + $0xb8] sm:$0xff]
    %v1887 = vld [vmem:[%s1862 + $0xc0] sm:$0xff]
    %v1888 = vld [vmem:[%s1862 + $0xc8] sm:$0xff]
    %v1889 = vld [vmem:[%s1862 + $0xd0] sm:$0xff]
    %v1890 = vld [vmem:[%s1862 + $0xd8] sm:$0xff]
    %v1891 = vld [vmem:[%s1862 + $0xe0] sm:$0xff]
    %v1892 = vld [vmem:[%s1862 + $0xe8] sm:$0xff]
    %v1893 = vld [vmem:[%s1862 + $0xf0] sm:$0xff]
    %v1894 = vld [vmem:[%s1862 + $0xf8] sm:$0xff]
    %s1895 = scalar_lea.vmem [#allocation10], 2
    %v1896 = vld [vmem:[%s1895] sm:$0x3]
    %v1898 = vperm.slane %v1896, 0
    %v1899 = vperm.slane %v1896, 1
    %v1934 = vunpack.c.l.b16 %v1863
    %v1935 = vunpack.c.h.b16 %v1863
    %v1936 = vunpack.c.l.b16 %v1864
    %v1937 = vunpack.c.h.b16 %v1864
    %v1938 = vunpack.c.l.b16 %v1865
    %v1939 = vunpack.c.h.b16 %v1865
    %v1940 = vunpack.c.l.b16 %v1866
    %v1941 = vunpack.c.h.b16 %v1866
    %v1942 = vunpack.c.l.b16 %v1867
    %v1943 = vunpack.c.h.b16 %v1867
    %v1944 = vunpack.c.l.b16 %v1868
    %v1945 = vunpack.c.h.b16 %v1868
    %v1946 = vunpack.c.l.b16 %v1869
    %v1947 = vunpack.c.h.b16 %v1869
    %v1948 = vunpack.c.l.b16 %v1870
    %v1949 = vunpack.c.h.b16 %v1870
    %v1950 = vunpack.c.l.b16 %v1871
    %v1951 = vunpack.c.h.b16 %v1871
    %v1952 = vunpack.c.l.b16 %v1872
    %v1953 = vunpack.c.h.b16 %v1872
    %v1954 = vunpack.c.l.b16 %v1873
    %v1955 = vunpack.c.h.b16 %v1873
    %v1956 = vunpack.c.l.b16 %v1874
    %v1957 = vunpack.c.h.b16 %v1874
    %v1958 = vunpack.c.l.b16 %v1875
    %v1959 = vunpack.c.h.b16 %v1875
    %v1960 = vunpack.c.l.b16 %v1876
    %v1961 = vunpack.c.h.b16 %v1876
    %v1962 = vunpack.c.l.b16 %v1877
    %v1963 = vunpack.c.h.b16 %v1877
    %v1964 = vunpack.c.l.b16 %v1878
    %v1965 = vunpack.c.h.b16 %v1878
    %v1966 = vunpack.c.l.b16 %v1879
    %v1967 = vunpack.c.h.b16 %v1879
    %v1968 = vunpack.c.l.b16 %v1880
    %v1969 = vunpack.c.h.b16 %v1880
    %v1970 = vunpack.c.l.b16 %v1881
    %v1971 = vunpack.c.h.b16 %v1881
    %v1972 = vunpack.c.l.b16 %v1882
    %v1973 = vunpack.c.h.b16 %v1882
    %v1974 = vunpack.c.l.b16 %v1883
    %v1975 = vunpack.c.h.b16 %v1883
    %v1976 = vunpack.c.l.b16 %v1884
    %v1977 = vunpack.c.h.b16 %v1884
    %v1978 = vunpack.c.l.b16 %v1885
    %v1979 = vunpack.c.h.b16 %v1885
    %v1980 = vunpack.c.l.b16 %v1886
    %v1981 = vunpack.c.h.b16 %v1886
    %v1982 = vunpack.c.l.b16 %v1887
    %v1983 = vunpack.c.h.b16 %v1887
    %v1984 = vunpack.c.l.b16 %v1888
    %v1985 = vunpack.c.h.b16 %v1888
    %v1986 = vunpack.c.l.b16 %v1889
    %v1987 = vunpack.c.h.b16 %v1889
    %v1988 = vunpack.c.l.b16 %v1890
    %v1989 = vunpack.c.h.b16 %v1890
    %v1990 = vunpack.c.l.b16 %v1891
    %v1991 = vunpack.c.h.b16 %v1891
    %v1992 = vunpack.c.l.b16 %v1892
    %v1993 = vunpack.c.h.b16 %v1892
    %v1994 = vunpack.c.l.b16 %v1893
    %v1995 = vunpack.c.h.b16 %v1893
    %v1996 = vunpack.c.l.b16 %v1894
    %v1997 = vunpack.c.h.b16 %v1894
    %v1998 = vpack.c.b16 %v1936, %v1934
    %v1999 = vpack.c.b16 %v1937, %v1935
    %v2000 = vpack.c.b16 %v1940, %v1938
    %v2001 = vpack.c.b16 %v1941, %v1939
    %v2002 = vpack.c.b16 %v1944, %v1942
    %v2003 = vpack.c.b16 %v1945, %v1943
    %v2004 = vpack.c.b16 %v1948, %v1946
    %v2005 = vpack.c.b16 %v1949, %v1947
    %v2006 = vpack.c.b16 %v1952, %v1950
    %v2007 = vpack.c.b16 %v1953, %v1951
    %v2008 = vpack.c.b16 %v1956, %v1954
    %v2009 = vpack.c.b16 %v1957, %v1955
    %v2010 = vpack.c.b16 %v1960, %v1958
    %v2011 = vpack.c.b16 %v1961, %v1959
    %v2012 = vpack.c.b16 %v1964, %v1962
    %v2013 = vpack.c.b16 %v1965, %v1963
    %v2014 = vpack.c.b16 %v1968, %v1966
    %v2015 = vpack.c.b16 %v1969, %v1967
    %v2016 = vpack.c.b16 %v1972, %v1970
    %v2017 = vpack.c.b16 %v1973, %v1971
    %v2018 = vpack.c.b16 %v1976, %v1974
    %v2019 = vpack.c.b16 %v1977, %v1975
    %v2020 = vpack.c.b16 %v1980, %v1978
    %v2021 = vpack.c.b16 %v1981, %v1979
    %v2022 = vpack.c.b16 %v1984, %v1982
    %v2023 = vpack.c.b16 %v1985, %v1983
    %v2024 = vpack.c.b16 %v1988, %v1986
    %v2025 = vpack.c.b16 %v1989, %v1987
    %v2026 = vpack.c.b16 %v1992, %v1990
    %v2027 = vpack.c.b16 %v1993, %v1991
    %v2028 = vpack.c.b16 %v1996, %v1994
    %v2029 = vpack.c.b16 %v1997, %v1995
    %2062 = vmatpush.bf16.msra.mxu0 %v2012
    %2063 = vmatpush.bf16.msra.mxu0 %v2010
    %2064 = vmatpush.bf16.msra.mxu0 %v2008
    %2065 = vmatpush.bf16.msra.mxu0 %v2006
    %2066 = vmatpush.bf16.msra.mxu0 %v2004
    %2067 = vmatpush.bf16.msra.mxu0 %v2002
    %2068 = vmatpush.bf16.msra.mxu0 %v2000
    %2069 = vmatpush.bf16.msra.mxu0 %v1998
    %2070 = vmatmul.bf16.gmra.mxu0 %v1860
    %v2071 = vpop.f32.mrf.mxu0
    %v2072 = vadd.f32 %v1898, %v2071
    %v2073 = vpop.f32.mrf.mxu0
    %2074 = vdwg.mxu0
    %2075 = vmatpush.bf16.msra.mxu0 %v2028
    %2076 = vmatpush.bf16.msra.mxu0 %v2026
    %2077 = vmatpush.bf16.msra.mxu0 %v2024
    %2078 = vmatpush.bf16.msra.mxu0 %v2022
    %2079 = vmatpush.bf16.msra.mxu0 %v2020
    %2080 = vmatpush.bf16.msra.mxu0 %v2018
    %2081 = vmatpush.bf16.msra.mxu0 %v2016
    %2082 = vmatpush.bf16.msra.mxu0 %v2014
    %2083 = vmatmul.bf16.gmra.mxu0 %v1861
    %v2084 = vpop.f32.mrf.mxu0
    %v2085 = vadd.f32 %v2072, %v2084
    %v2086 = vpop.f32.mrf.mxu0
    %2087 = vdwg.mxu0
    %2088 = vmatpush.bf16.msra.mxu0 %v2013
    %2089 = vmatpush.bf16.msra.mxu0 %v2011
    %2090 = vmatpush.bf16.msra.mxu0 %v2009
    %2091 = vmatpush.bf16.msra.mxu0 %v2007
    %2092 = vmatpush.bf16.msra.mxu0 %v2005
    %2093 = vmatpush.bf16.msra.mxu0 %v2003
    %2094 = vmatpush.bf16.msra.mxu0 %v2001
    %2095 = vmatpush.bf16.msra.mxu0 %v1999
    %2096 = vmatmul.bf16.gmra.mxu0 %v1860
    %v2097 = vpop.f32.mrf.mxu0
    %v2098 = vadd.f32 %v1899, %v2097
    %v2099 = vpop.f32.mrf.mxu0
    %2100 = vdwg.mxu0
    %2101 = vmatpush.bf16.msra.mxu0 %v2029
    %2102 = vmatpush.bf16.msra.mxu0 %v2027
    %2103 = vmatpush.bf16.msra.mxu0 %v2025
    %2104 = vmatpush.bf16.msra.mxu0 %v2023
    %2105 = vmatpush.bf16.msra.mxu0 %v2021
    %2106 = vmatpush.bf16.msra.mxu0 %v2019
    %2107 = vmatpush.bf16.msra.mxu0 %v2017
    %2108 = vmatpush.bf16.msra.mxu0 %v2015
    %2109 = vmatmul.bf16.gmra.mxu0 %v1861
    %v2110 = vpop.f32.mrf.mxu0
    %v2111 = vadd.f32 %v2098, %v2110
    %v2112 = vpop.f32.mrf.mxu0
    %2113 = vdwg.mxu0
    %s2114 = scalar_lea.vmem [#allocation11], 16
    %2115 = vst [vmem:[%s2114] sm:$0xff] %v2085
    %2116 = vst [vmem:[%s2114 + $0x8] sm:$0xff] %v2111
    // Predicated region
    $region42: #{tpu_custom_call.1} parent=1 // pred_check
      _
    $region43: #{tpu_custom_call.1} parent=1 // pred_check_branch
      %2118 = sbr.rel (0) target = $region45
    $region44: #{tpu_custom_call.1} parent=1 // pred_region
      %2120 = vsyncadd [#allocation4], 0
      %s2121 = sshll.u32 [#allocation11], 4
      %s2122 = int_to_ptr.vmem [resolvable:$true] %s2121
      %s2123 = sshll.u32 %s5, 4
      %s2124 = int_to_ptr.hbm [resolvable:$true] %s2123
      %2129 = dma.vmem_to_hbm [thread:$0]  %s2122, 512, %s2124, [#allocation4], 256, 256, 16
    $region45: #{tpu_custom_call.1} parent=1 // pred_fallthru
      _
    // Predicated region
    $region46: #{tpu_custom_call.1} parent=1 // pred_check
      _
    $region47: #{tpu_custom_call.1} parent=1 // pred_check_branch
      %2131 = sbr.rel (0) target = $region49
    $region48: #{tpu_custom_call.1} parent=1 // pred_region
      %2133 = dma.done [#allocation4], 512
    $region49: #{tpu_custom_call.1} parent=1 // pred_fallthru
      _
    %2134 = vsyncpa [#allocation3], 1
    %2135 = vsyncpa [#allocation6], 1
    %2136 = vsyncpa [#allocation9], 1
    %2137 = vsyncpa [#allocation4], 1

</llo_original>
